<compile_context>
chip_gen: v7x
topology: tpu7x:2x2x1
jax: 0.10.0
libtpu: 0.0.40
codegen_flags: <defaults>
</compile_context>

<pallas_src>
import functools

import jax
import jax.numpy as jnp
from jax.experimental import pallas as pl
from jax.experimental.pallas import tpu as pltpu

Z_DIM = 100
H1, H2 = 400, 200          # encoder hidden widths (logical)
H3, H4 = 250, 350          # decoder hidden widths (logical)
LANE = 128
SUBLANE = 8
NOISE_SCALE = 0.7          # add_noise: x + 0.7 * N(0, 1)


def _round_up(n, m):
    return (n + m - 1) // m * m


def _logical_dims(features):
    return [(features, H1), (H1, H2), (H2, Z_DIM),
            (Z_DIM, H3), (H3, H4), (H4, features)]


def _layer(h_bf16, w_ref, b_ref, *, relu):
    # bf16 x bf16 matmul on the MXU, f32 accumulation; bias + ReLU in f32.
    acc = jnp.dot(h_bf16, w_ref[...], preferred_element_type=jnp.float32)
    acc = acc + b_ref[...]
    if relu:
        acc = jnp.maximum(acc, 0.0)
    return acc


def _ae_kernel(xn_ref,
               w1, b1, w2, b2, w3, b3,        # encoder
               w4, b4, w5, b5, w6, b6,        # decoder
               out_ref):
    h = xn_ref[...]                            # noisy input, already bf16
    # encoder: Linear -> ReLU -> Linear -> ReLU -> Linear
    h = _layer(h, w1, b1, relu=True).astype(jnp.bfloat16)
    h = _layer(h, w2, b2, relu=True).astype(jnp.bfloat16)
    z = _layer(h, w3, b3, relu=False).astype(jnp.bfloat16)
    # decoder: Linear -> ReLU -> Linear -> ReLU -> Linear
    h = _layer(z, w4, b4, relu=True).astype(jnp.bfloat16)
    h = _layer(h, w5, b5, relu=True).astype(jnp.bfloat16)
    out_ref[...] = _layer(h, w6, b6, relu=False).astype(out_ref.dtype)


def init_params(key, features):
    """Deterministic Linear params; weights (in, out), biases (1, out), f32."""
    params = []
    for i, (din, dout) in enumerate(_logical_dims(features)):
        kw, kb = jax.random.split(jax.random.fold_in(key, i))
        bound = 1.0 / jnp.sqrt(jnp.float32(din))
        w = jax.random.uniform(kw, (din, dout), jnp.float32, -bound, bound)
        b = jax.random.uniform(kb, (1, dout), jnp.float32, -bound, bound)
        params += [w, b]
    return params


def prepare_params(params, features):
    """Pad each layer width to a multiple of 128 and cast weights to bf16.

    Zero padding is exact: padded input columns / weight rows contribute 0,
    padded bias entries are 0, and ReLU(0) == 0, so logical outputs are
    unchanged.  Call once, outside the per-call path.
    """
    padded = []
    for i, (din, dout) in enumerate(_logical_dims(features)):
        w, b = params[2 * i], params[2 * i + 1]
        din_p, dout_p = _round_up(din, LANE), _round_up(dout, LANE)
        w_p = jnp.pad(w, ((0, din_p - din), (0, dout_p - dout))).astype(jnp.bfloat16)
        b_p = jnp.pad(b, ((0, 0), (0, dout_p - dout))).astype(jnp.float32)
        padded += [w_p, b_p]
    return padded


@functools.partial(jax.jit, static_argnames=("block_b",))
def autoencoder_forward(x, noise, padded_params, *, block_b=1024):
    """Forward pass: add_noise -> encoder -> decoder.  `noise` ~ N(0, 1)."""
    B, F = x.shape
    Fp = _round_up(F, LANE)

    # Batch tile: multiple of 8, capped at block_b and at ceil(B/2) so the
    # grid has >= 2 steps whenever the batch allows it (v7x: 2 TCs both work).
    half = _round_up(max(_round_up(B, SUBLANE) // 2, SUBLANE), SUBLANE)
    TB = min(block_b, half)
    Bp = _round_up(B, TB)

    # add_noise + bf16 cast + single pad: one fused XLA op writing a bf16
    # slab (half the staged HBM traffic of an f32 intermediate); the kernel
    # then streams exactly one bf16 activation input.
    noisy = (x + NOISE_SCALE * noise).astype(jnp.bfloat16)
    noisy = jnp.pad(noisy, ((0, Bp - B), (0, Fp - F)))

    act_in_spec = pl.BlockSpec((TB, Fp), lambda i: (i, 0))
    act_out_spec = pl.BlockSpec((TB, Fp), lambda i: (i, 0))
    # Constant index_map -> block index never changes across the grid, so the
    # Pallas pipeline fetches these once and keeps them VMEM-resident.
    const_spec = lambda p: pl.BlockSpec(p.shape, lambda i: (0, 0))

    out = pl.pallas_call(
        _ae_kernel,
        out_shape=jax.ShapeDtypeStruct((Bp, Fp), jnp.float32),
        grid=(Bp // TB,),
        in_specs=[act_in_spec] + [const_spec(p) for p in padded_params],
        out_specs=act_out_spec,
        compiler_params=pltpu.CompilerParams(
            dimension_semantics=("parallel",),       # v7x: shard batch over 2 TCs
            vmem_limit_bytes=32 * 1024 * 1024),      # covers v5e's 16 MiB default
    )(noisy, *padded_params)

    return out[:B, :F]


if __name__ == "__main__":
    key = jax.random.PRNGKey(0)
    k_x, k_n, k_p = jax.random.split(key, 3)

    B, F = 8, 64                        # small demo batch, `features` = 64
    x = jax.random.normal(k_x, (B, F), jnp.float32)
    noise = jax.random.normal(k_n, (B, F), jnp.float32)   # unit normal; scaled inside

    params = init_params(k_p, F)                 # logical f32 params
    padded_params = prepare_params(params, F)    # padded + bf16, done once

    out = autoencoder_forward(x, noise, padded_params)
    jax.block_until_ready(out)

    # Pure-JAX reference mimicking the kernel numerics (bf16 matmul inputs,
    # f32 accumulation, f32 bias/ReLU) on the unpadded logical weights.
    def ref(x, noise, p):
        def lin(h, w, b, relu):
            acc = jnp.dot(h.astype(jnp.bfloat16), w.astype(jnp.bfloat16),
                          preferred_element_type=jnp.float32) + b
            return jnp.maximum(acc, 0.0) if relu else acc
        w1, b1, w2, b2, w3, b3, w4, b4, w5, b5, w6, b6 = p
        h = (x + NOISE_SCALE * noise).astype(jnp.bfloat16)
        h = lin(h, w1, b1, True)
        h = lin(h, w2, b2, True)
        z = lin(h, w3, b3, False)
        h = lin(z, w4, b4, True)
        h = lin(h, w5, b5, True)
        return lin(h, w6, b6, False)

    expected = ref(x, noise, params)
    assert out.shape == (B, F)
    assert jnp.allclose(out, expected, atol=5e-3, rtol=5e-3), float(
        jnp.max(jnp.abs(out - expected)))
    print("KERNEL_OK")
</pallas_src>

<mosaic_0001>
module attributes {stable_mosaic.version = 11 : i64} {
  func.func @_ae_kernel(%arg0: i32, %arg1: memref<8x128xbf16, #tpu.memory_space<vmem>>, %arg2: memref<128x512xbf16, #tpu.memory_space<vmem>>, %arg3: memref<1x512xf32, #tpu.memory_space<vmem>>, %arg4: memref<512x256xbf16, #tpu.memory_space<vmem>>, %arg5: memref<1x256xf32, #tpu.memory_space<vmem>>, %arg6: memref<256x128xbf16, #tpu.memory_space<vmem>>, %arg7: memref<1x128xf32, #tpu.memory_space<vmem>>, %arg8: memref<128x256xbf16, #tpu.memory_space<vmem>>, %arg9: memref<1x256xf32, #tpu.memory_space<vmem>>, %arg10: memref<256x384xbf16, #tpu.memory_space<vmem>>, %arg11: memref<1x384xf32, #tpu.memory_space<vmem>>, %arg12: memref<384x128xbf16, #tpu.memory_space<vmem>>, %arg13: memref<1x128xf32, #tpu.memory_space<vmem>>, %arg14: memref<8x128xf32, #tpu.memory_space<vmem>>) attributes {dimension_semantics = [#tpu.dimension_semantics<parallel>], iteration_bounds = array<i64: 1>, scalar_prefetch = 0 : i64, scratch_operands = 0 : i64, tpu.core_type = #tpu.core_type<tc>, window_params = [{transform_indices = @transform_0, window_bounds = array<i64: 8, 128>}, {pipeline_mode = #tpu.pipeline_mode<synchronous>, transform_indices = @transform_1, window_bounds = array<i64: 128, 512>}, {pipeline_mode = #tpu.pipeline_mode<synchronous>, transform_indices = @transform_2, window_bounds = array<i64: 1, 512>}, {pipeline_mode = #tpu.pipeline_mode<synchronous>, transform_indices = @transform_3, window_bounds = array<i64: 512, 256>}, {pipeline_mode = #tpu.pipeline_mode<synchronous>, transform_indices = @transform_4, window_bounds = array<i64: 1, 256>}, {pipeline_mode = #tpu.pipeline_mode<synchronous>, transform_indices = @transform_5, window_bounds = array<i64: 256, 128>}, {pipeline_mode = #tpu.pipeline_mode<synchronous>, transform_indices = @transform_6, window_bounds = array<i64: 1, 128>}, {pipeline_mode = #tpu.pipeline_mode<synchronous>, transform_indices = @transform_7, window_bounds = array<i64: 128, 256>}, {pipeline_mode = #tpu.pipeline_mode<synchronous>, transform_indices = @transform_8, window_bounds = array<i64: 1, 256>}, {pipeline_mode = #tpu.pipeline_mode<synchronous>, transform_indices = @transform_9, window_bounds = array<i64: 256, 384>}, {pipeline_mode = #tpu.pipeline_mode<synchronous>, transform_indices = @transform_10, window_bounds = array<i64: 1, 384>}, {pipeline_mode = #tpu.pipeline_mode<synchronous>, transform_indices = @transform_11, window_bounds = array<i64: 384, 128>}, {pipeline_mode = #tpu.pipeline_mode<synchronous>, transform_indices = @transform_12, window_bounds = array<i64: 1, 128>}, {transform_indices = @transform_13, window_bounds = array<i64: 8, 128>}]} {
    %c0 = arith.constant 0 : index
    %c0_0 = arith.constant 0 : index
    %0 = vector.load %arg1[%c0, %c0_0] : memref<8x128xbf16, #tpu.memory_space<vmem>>, vector<8x128xbf16>
    %c0_1 = arith.constant 0 : index
    %c0_2 = arith.constant 0 : index
    %1 = vector.load %arg2[%c0_1, %c0_2] : memref<128x512xbf16, #tpu.memory_space<vmem>>, vector<128x512xbf16>
    %cst = arith.constant dense<0.000000e+00> : vector<8x512xf32>
    %2 = tpu.matmul %0, %1, %cst {dimension_numbers = #tpu.dot_dimension_numbers<[1], [0], [0], [1], [0, 0, 1, 1], [], []>} : vector<8x128xbf16>, vector<128x512xbf16>, vector<8x512xf32> -> vector<8x512xf32>
    %c0_3 = arith.constant 0 : index
    %c0_4 = arith.constant 0 : index
    %3 = vector.load %arg3[%c0_3, %c0_4] : memref<1x512xf32, #tpu.memory_space<vmem>>, vector<1x512xf32>
    %4 = vector.broadcast %3 : vector<1x512xf32> to vector<8x512xf32>
    %5 = arith.addf %2, %4 : vector<8x512xf32>
    %cst_5 = arith.constant 0.000000e+00 : f32
    %6 = vector.broadcast %cst_5 : f32 to vector<8x512xf32>
    %7 = arith.maximumf %5, %6 : vector<8x512xf32>
    %8 = arith.truncf %7 : vector<8x512xf32> to vector<8x512xbf16>
    %c0_6 = arith.constant 0 : index
    %c0_7 = arith.constant 0 : index
    %9 = vector.load %arg4[%c0_6, %c0_7] : memref<512x256xbf16, #tpu.memory_space<vmem>>, vector<512x256xbf16>
    %cst_8 = arith.constant dense<0.000000e+00> : vector<8x256xf32>
    %10 = tpu.matmul %8, %9, %cst_8 {dimension_numbers = #tpu.dot_dimension_numbers<[1], [0], [0], [1], [0, 0, 1, 1], [], []>} : vector<8x512xbf16>, vector<512x256xbf16>, vector<8x256xf32> -> vector<8x256xf32>
    %c0_9 = arith.constant 0 : index
    %c0_10 = arith.constant 0 : index
    %11 = vector.load %arg5[%c0_9, %c0_10] : memref<1x256xf32, #tpu.memory_space<vmem>>, vector<1x256xf32>
    %12 = vector.broadcast %11 : vector<1x256xf32> to vector<8x256xf32>
    %13 = arith.addf %10, %12 : vector<8x256xf32>
    %cst_11 = arith.constant 0.000000e+00 : f32
    %14 = vector.broadcast %cst_11 : f32 to vector<8x256xf32>
    %15 = arith.maximumf %13, %14 : vector<8x256xf32>
    %16 = arith.truncf %15 : vector<8x256xf32> to vector<8x256xbf16>
    %c0_12 = arith.constant 0 : index
    %c0_13 = arith.constant 0 : index
    %17 = vector.load %arg6[%c0_12, %c0_13] : memref<256x128xbf16, #tpu.memory_space<vmem>>, vector<256x128xbf16>
    %cst_14 = arith.constant dense<0.000000e+00> : vector<8x128xf32>
    %18 = tpu.matmul %16, %17, %cst_14 {dimension_numbers = #tpu.dot_dimension_numbers<[1], [0], [0], [1], [0, 0, 1, 1], [], []>} : vector<8x256xbf16>, vector<256x128xbf16>, vector<8x128xf32> -> vector<8x128xf32>
    %c0_15 = arith.constant 0 : index
    %c0_16 = arith.constant 0 : index
    %19 = vector.load %arg7[%c0_15, %c0_16] : memref<1x128xf32, #tpu.memory_space<vmem>>, vector<1x128xf32>
    %20 = vector.broadcast %19 : vector<1x128xf32> to vector<8x128xf32>
    %21 = arith.addf %18, %20 : vector<8x128xf32>
    %22 = arith.truncf %21 : vector<8x128xf32> to vector<8x128xbf16>
    %c0_17 = arith.constant 0 : index
    %c0_18 = arith.constant 0 : index
    %23 = vector.load %arg8[%c0_17, %c0_18] : memref<128x256xbf16, #tpu.memory_space<vmem>>, vector<128x256xbf16>
    %cst_19 = arith.constant dense<0.000000e+00> : vector<8x256xf32>
    %24 = tpu.matmul %22, %23, %cst_19 {dimension_numbers = #tpu.dot_dimension_numbers<[1], [0], [0], [1], [0, 0, 1, 1], [], []>} : vector<8x128xbf16>, vector<128x256xbf16>, vector<8x256xf32> -> vector<8x256xf32>
    %c0_20 = arith.constant 0 : index
    %c0_21 = arith.constant 0 : index
    %25 = vector.load %arg9[%c0_20, %c0_21] : memref<1x256xf32, #tpu.memory_space<vmem>>, vector<1x256xf32>
    %26 = vector.broadcast %25 : vector<1x256xf32> to vector<8x256xf32>
    %27 = arith.addf %24, %26 : vector<8x256xf32>
    %cst_22 = arith.constant 0.000000e+00 : f32
    %28 = vector.broadcast %cst_22 : f32 to vector<8x256xf32>
    %29 = arith.maximumf %27, %28 : vector<8x256xf32>
    %30 = arith.truncf %29 : vector<8x256xf32> to vector<8x256xbf16>
    %c0_23 = arith.constant 0 : index
    %c0_24 = arith.constant 0 : index
    %31 = vector.load %arg10[%c0_23, %c0_24] : memref<256x384xbf16, #tpu.memory_space<vmem>>, vector<256x384xbf16>
    %cst_25 = arith.constant dense<0.000000e+00> : vector<8x384xf32>
    %32 = tpu.matmul %30, %31, %cst_25 {dimension_numbers = #tpu.dot_dimension_numbers<[1], [0], [0], [1], [0, 0, 1, 1], [], []>} : vector<8x256xbf16>, vector<256x384xbf16>, vector<8x384xf32> -> vector<8x384xf32>
    %c0_26 = arith.constant 0 : index
    %c0_27 = arith.constant 0 : index
    %33 = vector.load %arg11[%c0_26, %c0_27] : memref<1x384xf32, #tpu.memory_space<vmem>>, vector<1x384xf32>
    %34 = vector.broadcast %33 : vector<1x384xf32> to vector<8x384xf32>
    %35 = arith.addf %32, %34 : vector<8x384xf32>
    %cst_28 = arith.constant 0.000000e+00 : f32
    %36 = vector.broadcast %cst_28 : f32 to vector<8x384xf32>
    %37 = arith.maximumf %35, %36 : vector<8x384xf32>
    %38 = arith.truncf %37 : vector<8x384xf32> to vector<8x384xbf16>
    %c0_29 = arith.constant 0 : index
    %c0_30 = arith.constant 0 : index
    %39 = vector.load %arg12[%c0_29, %c0_30] : memref<384x128xbf16, #tpu.memory_space<vmem>>, vector<384x128xbf16>
    %cst_31 = arith.constant dense<0.000000e+00> : vector<8x128xf32>
    %40 = tpu.matmul %38, %39, %cst_31 {dimension_numbers = #tpu.dot_dimension_numbers<[1], [0], [0], [1], [0, 0, 1, 1], [], []>} : vector<8x384xbf16>, vector<384x128xbf16>, vector<8x128xf32> -> vector<8x128xf32>
    %c0_32 = arith.constant 0 : index
    %c0_33 = arith.constant 0 : index
    %41 = vector.load %arg13[%c0_32, %c0_33] : memref<1x128xf32, #tpu.memory_space<vmem>>, vector<1x128xf32>
    %42 = vector.broadcast %41 : vector<1x128xf32> to vector<8x128xf32>
    %43 = arith.addf %40, %42 : vector<8x128xf32>
    %c0_34 = arith.constant 0 : index
    %c0_35 = arith.constant 0 : index
    %44 = vector.load %arg14[%c0_34, %c0_35] : memref<8x128xf32, #tpu.memory_space<vmem>>, vector<8x128xf32>
    tpu.vector_store %arg14[%c0_34, %c0_35], %43 {strides = array<i32>} : memref<8x128xf32, #tpu.memory_space<vmem>>, vector<8x128xf32>,
    return
  }
  func.func @transform_0(%arg0: i32) -> (i32, i32) {
    %c0_i32 = arith.constant 0 : i32
    %c0_i32_0 = arith.constant 0 : i32
    return %arg0, %c0_i32 : i32, i32
  }
  func.func @transform_1(%arg0: i32) -> (i32, i32) {
    %c0_i32 = arith.constant 0 : i32
    %c0_i32_0 = arith.constant 0 : i32
    %c0_i32_1 = arith.constant 0 : i32
    return %c0_i32, %c0_i32_0 : i32, i32
  }
  func.func @transform_2(%arg0: i32) -> (i32, i32) {
    %c0_i32 = arith.constant 0 : i32
    %c0_i32_0 = arith.constant 0 : i32
    %c0_i32_1 = arith.constant 0 : i32
    return %c0_i32, %c0_i32_0 : i32, i32
  }
  func.func @transform_3(%arg0: i32) -> (i32, i32) {
    %c0_i32 = arith.constant 0 : i32
    %c0_i32_0 = arith.constant 0 : i32
    %c0_i32_1 = arith.constant 0 : i32
    return %c0_i32, %c0_i32_0 : i32, i32
  }
  func.func @transform_4(%arg0: i32) -> (i32, i32) {
    %c0_i32 = arith.constant 0 : i32
    %c0_i32_0 = arith.constant 0 : i32
    %c0_i32_1 = arith.constant 0 : i32
    return %c0_i32, %c0_i32_0 : i32, i32
  }
  func.func @transform_5(%arg0: i32) -> (i32, i32) {
    %c0_i32 = arith.constant 0 : i32
    %c0_i32_0 = arith.constant 0 : i32
    %c0_i32_1 = arith.constant 0 : i32
    return %c0_i32, %c0_i32_0 : i32, i32
  }
  func.func @transform_6(%arg0: i32) -> (i32, i32) {
    %c0_i32 = arith.constant 0 : i32
    %c0_i32_0 = arith.constant 0 : i32
    %c0_i32_1 = arith.constant 0 : i32
    return %c0_i32, %c0_i32_0 : i32, i32
  }
  func.func @transform_7(%arg0: i32) -> (i32, i32) {
    %c0_i32 = arith.constant 0 : i32
    %c0_i32_0 = arith.constant 0 : i32
    %c0_i32_1 = arith.constant 0 : i32
    return %c0_i32, %c0_i32_0 : i32, i32
  }
  func.func @transform_8(%arg0: i32) -> (i32, i32) {
    %c0_i32 = arith.constant 0 : i32
    %c0_i32_0 = arith.constant 0 : i32
    %c0_i32_1 = arith.constant 0 : i32
    return %c0_i32, %c0_i32_0 : i32, i32
  }
  func.func @transform_9(%arg0: i32) -> (i32, i32) {
    %c0_i32 = arith.constant 0 : i32
    %c0_i32_0 = arith.constant 0 : i32
    %c0_i32_1 = arith.constant 0 : i32
    return %c0_i32, %c0_i32_0 : i32, i32
  }
  func.func @transform_10(%arg0: i32) -> (i32, i32) {
    %c0_i32 = arith.constant 0 : i32
    %c0_i32_0 = arith.constant 0 : i32
    %c0_i32_1 = arith.constant 0 : i32
    return %c0_i32, %c0_i32_0 : i32, i32
  }
  func.func @transform_11(%arg0: i32) -> (i32, i32) {
    %c0_i32 = arith.constant 0 : i32
    %c0_i32_0 = arith.constant 0 : i32
    %c0_i32_1 = arith.constant 0 : i32
    return %c0_i32, %c0_i32_0 : i32, i32
  }
  func.func @transform_12(%arg0: i32) -> (i32, i32) {
    %c0_i32 = arith.constant 0 : i32
    %c0_i32_0 = arith.constant 0 : i32
    %c0_i32_1 = arith.constant 0 : i32
    return %c0_i32, %c0_i32_0 : i32, i32
  }
  func.func @transform_13(%arg0: i32) -> (i32, i32) {
    %c0_i32 = arith.constant 0 : i32
    %c0_i32_0 = arith.constant 0 : i32
    return %arg0, %c0_i32 : i32, i32
  }
}

</mosaic_0001>

<llo_original>
// kernel: autoencoder_forward.1
$region0: #{autoencoder_forward.1}
  #allocation0 [shape = 'u32[]', space=smem, size = 0x4, offset = 0x4, fixed_abs, tag = 'smem constant byte address 0x4 - core index']
  #allocation1 [shape = 'u32[144,128]{1,0:T(1,128)}', space=vmem, size = 0x12000, scoped, tag = 'internal scratch']
  %s0 = inlined_call_operand.vmem [shape: bf16[8,128], index: 0, kind: input, shape index: {}]
  %s1 = inlined_call_operand.hbm [shape: bf16[128,512], index: 1, kind: input, shape index: {}]
  %s2 = inlined_call_operand.vmem [shape: f32[1,512], index: 2, kind: input, shape index: {}]
  %s3 = inlined_call_operand.hbm [shape: bf16[512,256], index: 3, kind: input, shape index: {}]
  %s4 = inlined_call_operand.vmem [shape: f32[1,256], index: 4, kind: input, shape index: {}]
  %s5 = inlined_call_operand.hbm [shape: bf16[256,128], index: 5, kind: input, shape index: {}]
  %s6 = inlined_call_operand.vmem [shape: f32[1,128], index: 6, kind: input, shape index: {}]
  %s7 = inlined_call_operand.hbm [shape: bf16[128,256], index: 7, kind: input, shape index: {}]
  %s8 = inlined_call_operand.vmem [shape: f32[1,256], index: 8, kind: input, shape index: {}]
  %s9 = inlined_call_operand.hbm [shape: bf16[256,384], index: 9, kind: input, shape index: {}]
  %s10 = inlined_call_operand.vmem [shape: f32[1,384], index: 10, kind: input, shape index: {}]
  %s11 = inlined_call_operand.hbm [shape: bf16[384,128], index: 11, kind: input, shape index: {}]
  %s12 = inlined_call_operand.vmem [shape: f32[1,128], index: 12, kind: input, shape index: {}]
  %s13 = inlined_call_operand.hbm [shape: f32[8,128], index: 13, kind: output, shape index: {}]
  %s14 = sld [smem:[#allocation0]]
  $region86: #{autoencoder_forward.1} parent=0
    _
  %s16 = ssub.s32 1, %s14
  %s17 = scalar_select 0, %s16, %s14
  $region1: #{autoencoder_forward.1} parent=0
    #allocation2 [shape = 'u8[131072]{0}', space=vmem, size = 0x20000, scoped, tag = 'input window, operand 1, single buffered']
    #allocation3 [shape = 's32[1]{0}', space=sflag, size = 0x4, scoped, tag = 'scoped memory for autoencoder_forward.1']
    #allocation4 [shape = 's32[1]{0}', space=sflag, size = 0x4, scoped, tag = 'scoped memory for autoencoder_forward.1']
    #allocation5 [shape = 'u8[262144]{0}', space=vmem, size = 0x40000, scoped, tag = 'input window, operand 3, single buffered']
    #allocation6 [shape = 's32[1]{0}', space=sflag, size = 0x4, scoped, tag = 'scoped memory for autoencoder_forward.1']
    #allocation7 [shape = 'u8[65536]{0}', space=vmem, size = 0x10000, scoped, tag = 'input window, operand 5, single buffered']
    #allocation8 [shape = 'u8[65536]{0}', space=vmem, size = 0x10000, scoped, tag = 'input window, operand 7, single buffered']
    #allocation9 [shape = 's32[1]{0}', space=sflag, size = 0x4, scoped, tag = 'scoped memory for autoencoder_forward.1']
    #allocation10 [shape = 'u8[196608]{0}', space=vmem, size = 0x30000, scoped, tag = 'input window, operand 9, single buffered']
    #allocation11 [shape = 'u8[98304]{0}', space=vmem, size = 0x18000, scoped, tag = 'input window, operand 11, single buffered']
    #allocation12 [shape = 's32[1]{0}', space=sflag, size = 0x4, scoped, tag = 'scoped memory for autoencoder_forward.1']
    #allocation13 [shape = 'u8[4096]{0}', space=vmem, size = 0x1000, scoped, tag = 'output window, operand 0, single buffered']
    %18 = vsyncpa [#allocation3], 0
    %19 = vsyncpa [#allocation6], 0
    %20 = vsyncpa [#allocation9], 0
    %21 = vsyncpa [#allocation12], 0
    %22 = vsyncpa [#allocation4], 0
    // Predicated region
    $region2: #{autoencoder_forward.1} parent=1 // pred_check
      _
    $region3: #{autoencoder_forward.1} parent=1 // pred_check_branch
      %24 = sbr.rel (0) target = $region5
    $region4: #{autoencoder_forward.1} parent=1 // pred_region
      _
    $region5: #{autoencoder_forward.1} parent=1 // pred_fallthru
      _
    // Predicated region
    $region6: #{autoencoder_forward.1} parent=1 // pred_check
      _
    $region7: #{autoencoder_forward.1} parent=1 // pred_check_branch
      %26 = sbr.rel (0) target = $region9
    $region8: #{autoencoder_forward.1} parent=1 // pred_region
      %s28 = ssub.s32 4096, 4096
      %29 = vsyncadd [#allocation3], %s28
      %s30 = sshll.u32 [#allocation2], 4
      %s31 = int_to_ptr.vmem [resolvable:$true] %s30
      %36 = dma.hbm_to_vmem [thread:$0]  %s1, 4096, %s31, [#allocation3], 256, 256, 16
    $region9: #{autoencoder_forward.1} parent=1 // pred_fallthru
      _
    // Predicated region
    $region10: #{autoencoder_forward.1} parent=1 // pred_check
      _
    $region11: #{autoencoder_forward.1} parent=1 // pred_check_branch
      %38 = sbr.rel (0) target = $region13
    $region12: #{autoencoder_forward.1} parent=1 // pred_region
      _
    $region13: #{autoencoder_forward.1} parent=1 // pred_fallthru
      _
    // Predicated region
    $region14: #{autoencoder_forward.1} parent=1 // pred_check
      _
    $region15: #{autoencoder_forward.1} parent=1 // pred_check_branch
      %40 = sbr.rel (0) target = $region17
    $region16: #{autoencoder_forward.1} parent=1 // pred_region
      %s42 = ssub.s32 8192, 8192
      %43 = vsyncadd [#allocation6], %s42
      %s44 = sshll.u32 [#allocation5], 4
      %s45 = int_to_ptr.vmem [resolvable:$true] %s44
      %50 = dma.hbm_to_vmem [thread:$0]  %s3, 8192, %s45, [#allocation6], 128, 128, 8
    $region17: #{autoencoder_forward.1} parent=1 // pred_fallthru
      _
    // Predicated region
    $region18: #{autoencoder_forward.1} parent=1 // pred_check
      _
    $region19: #{autoencoder_forward.1} parent=1 // pred_check_branch
      %52 = sbr.rel (0) target = $region21
    $region20: #{autoencoder_forward.1} parent=1 // pred_region
      _
    $region21: #{autoencoder_forward.1} parent=1 // pred_fallthru
      _
    // Predicated region
    $region22: #{autoencoder_forward.1} parent=1 // pred_check
      _
    $region23: #{autoencoder_forward.1} parent=1 // pred_check_branch
      %54 = sbr.rel (0) target = $region25
    $region24: #{autoencoder_forward.1} parent=1 // pred_region
      %s56 = ssub.s32 2048, 2048
      %57 = vsyncadd [#allocation6], %s56
      %s58 = sshll.u32 [#allocation7], 4
      %s59 = int_to_ptr.vmem [resolvable:$true] %s58
      %64 = dma.hbm_to_vmem [thread:$0]  %s5, 2048, %s59, [#allocation6], 64, 64, 4
    $region25: #{autoencoder_forward.1} parent=1 // pred_fallthru
      _
    // Predicated region
    $region26: #{autoencoder_forward.1} parent=1 // pred_check
      _
    $region27: #{autoencoder_forward.1} parent=1 // pred_check_branch
      %66 = sbr.rel (0) target = $region29
    $region28: #{autoencoder_forward.1} parent=1 // pred_region
      _
    $region29: #{autoencoder_forward.1} parent=1 // pred_fallthru
      _
    // Predicated region
    $region30: #{autoencoder_forward.1} parent=1 // pred_check
      _
    $region31: #{autoencoder_forward.1} parent=1 // pred_check_branch
      %68 = sbr.rel (0) target = $region33
    $region32: #{autoencoder_forward.1} parent=1 // pred_region
      %s70 = ssub.s32 2048, 2048
      %71 = vsyncadd [#allocation9], %s70
      %s72 = sshll.u32 [#allocation8], 4
      %s73 = int_to_ptr.vmem [resolvable:$true] %s72
      %78 = dma.hbm_to_vmem [thread:$0]  %s7, 2048, %s73, [#allocation9], 128, 128, 8
    $region33: #{autoencoder_forward.1} parent=1 // pred_fallthru
      _
    // Predicated region
    $region34: #{autoencoder_forward.1} parent=1 // pred_check
      _
    $region35: #{autoencoder_forward.1} parent=1 // pred_check_branch
      %80 = sbr.rel (0) target = $region37
    $region36: #{autoencoder_forward.1} parent=1 // pred_region
      _
    $region37: #{autoencoder_forward.1} parent=1 // pred_fallthru
      _
    // Predicated region
    $region38: #{autoencoder_forward.1} parent=1 // pred_check
      _
    $region39: #{autoencoder_forward.1} parent=1 // pred_check_branch
      %82 = sbr.rel (0) target = $region41
    $region40: #{autoencoder_forward.1} parent=1 // pred_region
      %s84 = ssub.s32 6144, 6144
      %85 = vsyncadd [#allocation9], %s84
      %s86 = sshll.u32 [#allocation10], 4
      %s87 = int_to_ptr.vmem [resolvable:$true] %s86
      %92 = dma.hbm_to_vmem [thread:$0]  %s9, 6144, %s87, [#allocation9], 192, 192, 12
    $region41: #{autoencoder_forward.1} parent=1 // pred_fallthru
      _
    // Predicated region
    $region42: #{autoencoder_forward.1} parent=1 // pred_check
      _
    $region43: #{autoencoder_forward.1} parent=1 // pred_check_branch
      %94 = sbr.rel (0) target = $region45
    $region44: #{autoencoder_forward.1} parent=1 // pred_region
      _
    $region45: #{autoencoder_forward.1} parent=1 // pred_fallthru
      _
    // Predicated region
    $region46: #{autoencoder_forward.1} parent=1 // pred_check
      _
    $region47: #{autoencoder_forward.1} parent=1 // pred_check_branch
      %96 = sbr.rel (0) target = $region49
    $region48: #{autoencoder_forward.1} parent=1 // pred_region
      %s98 = ssub.s32 3072, 3072
      %99 = vsyncadd [#allocation12], %s98
      %s100 = sshll.u32 [#allocation11], 4
      %s101 = int_to_ptr.vmem [resolvable:$true] %s100
      %106 = dma.hbm_to_vmem [thread:$0]  %s11, 3072, %s101, [#allocation12], 64, 64, 4
    $region49: #{autoencoder_forward.1} parent=1 // pred_fallthru
      _
    // Predicated region
    $region50: #{autoencoder_forward.1} parent=1 // pred_check
      _
    $region51: #{autoencoder_forward.1} parent=1 // pred_check_branch
      %108 = sbr.rel (0) target = $region53
    $region52: #{autoencoder_forward.1} parent=1 // pred_region
      _
    $region53: #{autoencoder_forward.1} parent=1 // pred_fallthru
      _
    // Predicated region
    $region54: #{autoencoder_forward.1} parent=1 // pred_check
      _
    $region55: #{autoencoder_forward.1} parent=1 // pred_check_branch
      %110 = sbr.rel (0) target = $region57
    $region56: #{autoencoder_forward.1} parent=1 // pred_region
      %111 = dma.done [#allocation3], 4096
    $region57: #{autoencoder_forward.1} parent=1 // pred_fallthru
      _
    // Predicated region
    $region58: #{autoencoder_forward.1} parent=1 // pred_check
      _
    $region59: #{autoencoder_forward.1} parent=1 // pred_check_branch
      %113 = sbr.rel (0) target = $region61
    $region60: #{autoencoder_forward.1} parent=1 // pred_region
      %114 = dma.done [#allocation6], 8192
    $region61: #{autoencoder_forward.1} parent=1 // pred_fallthru
      _
    // Predicated region
    $region62: #{autoencoder_forward.1} parent=1 // pred_check
      _
    $region63: #{autoencoder_forward.1} parent=1 // pred_check_branch
      %116 = sbr.rel (0) target = $region65
    $region64: #{autoencoder_forward.1} parent=1 // pred_region
      %117 = dma.done [#allocation6], 2048
    $region65: #{autoencoder_forward.1} parent=1 // pred_fallthru
      _
    // Predicated region
    $region66: #{autoencoder_forward.1} parent=1 // pred_check
      _
    $region67: #{autoencoder_forward.1} parent=1 // pred_check_branch
      %119 = sbr.rel (0) target = $region69
    $region68: #{autoencoder_forward.1} parent=1 // pred_region
      %120 = dma.done [#allocation9], 2048
    $region69: #{autoencoder_forward.1} parent=1 // pred_fallthru
      _
    // Predicated region
    $region70: #{autoencoder_forward.1} parent=1 // pred_check
      _
    $region71: #{autoencoder_forward.1} parent=1 // pred_check_branch
      %122 = sbr.rel (0) target = $region73
    $region72: #{autoencoder_forward.1} parent=1 // pred_region
      %123 = dma.done [#allocation9], 6144
    $region73: #{autoencoder_forward.1} parent=1 // pred_fallthru
      _
    // Predicated region
    $region74: #{autoencoder_forward.1} parent=1 // pred_check
      _
    $region75: #{autoencoder_forward.1} parent=1 // pred_check_branch
      %125 = sbr.rel (0) target = $region77
    $region76: #{autoencoder_forward.1} parent=1 // pred_region
      %126 = dma.done [#allocation12], 3072
    $region77: #{autoencoder_forward.1} parent=1 // pred_fallthru
      _
    %v128 = vld [vmem:[%s0] sm:$0xf]
    %v129 = vld [vmem:[#allocation2] sm:$0xff]
    %v130 = vld [vmem:[#allocation2 + $0x8] sm:$0xff]
    %v131 = vld [vmem:[#allocation2 + $0x10] sm:$0xff]
    %v132 = vld [vmem:[#allocation2 + $0x18] sm:$0xff]
    %v133 = vld [vmem:[#allocation2 + $0x20] sm:$0xff]
    %v134 = vld [vmem:[#allocation2 + $0x28] sm:$0xff]
    %v135 = vld [vmem:[#allocation2 + $0x30] sm:$0xff]
    %v136 = vld [vmem:[#allocation2 + $0x38] sm:$0xff]
    %v137 = vld [vmem:[#allocation2 + $0x40] sm:$0xff]
    %v138 = vld [vmem:[#allocation2 + $0x48] sm:$0xff]
    %v139 = vld [vmem:[#allocation2 + $0x50] sm:$0xff]
    %v140 = vld [vmem:[#allocation2 + $0x58] sm:$0xff]
    %v141 = vld [vmem:[#allocation2 + $0x60] sm:$0xff]
    %v142 = vld [vmem:[#allocation2 + $0x68] sm:$0xff]
    %v143 = vld [vmem:[#allocation2 + $0x70] sm:$0xff]
    %v144 = vld [vmem:[#allocation2 + $0x78] sm:$0xff]
    %v145 = vld [vmem:[#allocation2 + $0x80] sm:$0xff]
    %v146 = vld [vmem:[#allocation2 + $0x88] sm:$0xff]
    %v147 = vld [vmem:[#allocation2 + $0x90] sm:$0xff]
    %v148 = vld [vmem:[#allocation2 + $0x98] sm:$0xff]
    %v149 = vld [vmem:[#allocation2 + $0xa0] sm:$0xff]
    %v150 = vld [vmem:[#allocation2 + $0xa8] sm:$0xff]
    %v151 = vld [vmem:[#allocation2 + $0xb0] sm:$0xff]
    %v152 = vld [vmem:[#allocation2 + $0xb8] sm:$0xff]
    %v153 = vld [vmem:[#allocation2 + $0xc0] sm:$0xff]
    %v154 = vld [vmem:[#allocation2 + $0xc8] sm:$0xff]
    %v155 = vld [vmem:[#allocation2 + $0xd0] sm:$0xff]
    %v156 = vld [vmem:[#allocation2 + $0xd8] sm:$0xff]
    %v157 = vld [vmem:[#allocation2 + $0xe0] sm:$0xff]
    %v158 = vld [vmem:[#allocation2 + $0xe8] sm:$0xff]
    %v159 = vld [vmem:[#allocation2 + $0xf0] sm:$0xff]
    %v160 = vld [vmem:[#allocation2 + $0xf8] sm:$0xff]
    %v161 = vld [vmem:[%s2] sm:$0xf]
    %v163 = vlaneseq
    %v164 = vshrl.u32 %v163, 7
    %v165 = vsub.s32 0, %v164
    %v166 = vrot.slane %v161, %v165
    %v167 = vlaneseq
    %v168 = vshrl.u32 %v167, 7
    %v169 = vsub.s32 1, %v168
    %v170 = vrot.slane %v161, %v169
    %v171 = vlaneseq
    %v172 = vshrl.u32 %v171, 7
    %v173 = vsub.s32 2, %v172
    %v174 = vrot.slane %v161, %v173
    %v175 = vlaneseq
    %v176 = vshrl.u32 %v175, 7
    %v177 = vsub.s32 3, %v176
    %v178 = vrot.slane %v161, %v177
    %v215 = vunpack.c.l.b16 %v129
    %v216 = vunpack.c.h.b16 %v129
    %v217 = vunpack.c.l.b16 %v130
    %v218 = vunpack.c.h.b16 %v130
    %v219 = vunpack.c.l.b16 %v131
    %v220 = vunpack.c.h.b16 %v131
    %v221 = vunpack.c.l.b16 %v132
    %v222 = vunpack.c.h.b16 %v132
    %v223 = vunpack.c.l.b16 %v133
    %v224 = vunpack.c.h.b16 %v133
    %v225 = vunpack.c.l.b16 %v134
    %v226 = vunpack.c.h.b16 %v134
    %v227 = vunpack.c.l.b16 %v135
    %v228 = vunpack.c.h.b16 %v135
    %v229 = vunpack.c.l.b16 %v136
    %v230 = vunpack.c.h.b16 %v136
    %v231 = vunpack.c.l.b16 %v137
    %v232 = vunpack.c.h.b16 %v137
    %v233 = vunpack.c.l.b16 %v138
    %v234 = vunpack.c.h.b16 %v138
    %v235 = vunpack.c.l.b16 %v139
    %v236 = vunpack.c.h.b16 %v139
    %v237 = vunpack.c.l.b16 %v140
    %v238 = vunpack.c.h.b16 %v140
    %v239 = vunpack.c.l.b16 %v141
    %v240 = vunpack.c.h.b16 %v141
    %v241 = vunpack.c.l.b16 %v142
    %v242 = vunpack.c.h.b16 %v142
    %v243 = vunpack.c.l.b16 %v143
    %v244 = vunpack.c.h.b16 %v143
    %v245 = vunpack.c.l.b16 %v144
    %v246 = vunpack.c.h.b16 %v144
    %v247 = vunpack.c.l.b16 %v145
    %v248 = vunpack.c.h.b16 %v145
    %v249 = vunpack.c.l.b16 %v146
    %v250 = vunpack.c.h.b16 %v146
    %v251 = vunpack.c.l.b16 %v147
    %v252 = vunpack.c.h.b16 %v147
    %v253 = vunpack.c.l.b16 %v148
    %v254 = vunpack.c.h.b16 %v148
    %v255 = vunpack.c.l.b16 %v149
    %v256 = vunpack.c.h.b16 %v149
    %v257 = vunpack.c.l.b16 %v150
    %v258 = vunpack.c.h.b16 %v150
    %v259 = vunpack.c.l.b16 %v151
    %v260 = vunpack.c.h.b16 %v151
    %v261 = vunpack.c.l.b16 %v152
    %v262 = vunpack.c.h.b16 %v152
    %v263 = vunpack.c.l.b16 %v153
    %v264 = vunpack.c.h.b16 %v153
    %v265 = vunpack.c.l.b16 %v154
    %v266 = vunpack.c.h.b16 %v154
    %v267 = vunpack.c.l.b16 %v155
    %v268 = vunpack.c.h.b16 %v155
    %v269 = vunpack.c.l.b16 %v156
    %v270 = vunpack.c.h.b16 %v156
    %v271 = vunpack.c.l.b16 %v157
    %v272 = vunpack.c.h.b16 %v157
    %v273 = vunpack.c.l.b16 %v158
    %v274 = vunpack.c.h.b16 %v158
    %v275 = vunpack.c.l.b16 %v159
    %v276 = vunpack.c.h.b16 %v159
    %v277 = vunpack.c.l.b16 %v160
    %v278 = vunpack.c.h.b16 %v160
    %v279 = vpack.c.b16 %v219, %v215
    %v280 = vpack.c.b16 %v220, %v216
    %v281 = vpack.c.b16 %v221, %v217
    %v282 = vpack.c.b16 %v222, %v218
    %v283 = vpack.c.b16 %v227, %v223
    %v284 = vpack.c.b16 %v228, %v224
    %v285 = vpack.c.b16 %v229, %v225
    %v286 = vpack.c.b16 %v230, %v226
    %v287 = vpack.c.b16 %v235, %v231
    %v288 = vpack.c.b16 %v236, %v232
    %v289 = vpack.c.b16 %v237, %v233
    %v290 = vpack.c.b16 %v238, %v234
    %v291 = vpack.c.b16 %v243, %v239
    %v292 = vpack.c.b16 %v244, %v240
    %v293 = vpack.c.b16 %v245, %v241
    %v294 = vpack.c.b16 %v246, %v242
    %v295 = vpack.c.b16 %v251, %v247
    %v296 = vpack.c.b16 %v252, %v248
    %v297 = vpack.c.b16 %v253, %v249
    %v298 = vpack.c.b16 %v254, %v250
    %v299 = vpack.c.b16 %v259, %v255
    %v300 = vpack.c.b16 %v260, %v256
    %v301 = vpack.c.b16 %v261, %v257
    %v302 = vpack.c.b16 %v262, %v258
    %v303 = vpack.c.b16 %v267, %v263
    %v304 = vpack.c.b16 %v268, %v264
    %v305 = vpack.c.b16 %v269, %v265
    %v306 = vpack.c.b16 %v270, %v266
    %v307 = vpack.c.b16 %v275, %v271
    %v308 = vpack.c.b16 %v276, %v272
    %v309 = vpack.c.b16 %v277, %v273
    %v310 = vpack.c.b16 %v278, %v274
    %343 = vmatprep.subr.bf16.mxu0 %v280
    %344 = vmatpush1.bf16.msra.mxu0 %v279
    %345 = vmatprep.subr.bf16.mxu0 %v284
    %346 = vmatpush1.bf16.msra.mxu0 %v283
    %347 = vmatprep.subr.bf16.mxu0 %v288
    %348 = vmatpush1.bf16.msra.mxu0 %v287
    %349 = vmatprep.subr.bf16.mxu0 %v292
    %350 = vmatpush1.bf16.msra.mxu0 %v291
    %351 = vmatprep.subr.bf16.mxu0 %v296
    %352 = vmatpush1.bf16.msra.mxu0 %v295
    %353 = vmatprep.subr.bf16.mxu0 %v300
    %354 = vmatpush1.bf16.msra.mxu0 %v299
    %355 = vmatprep.subr.bf16.mxu0 %v304
    %356 = vmatpush1.bf16.msra.mxu0 %v303
    %357 = vmatprep.subr.bf16.mxu0 %v308
    %358 = vmatpush1.bf16.msra.mxu0 %v307
    %359 = vmatprep.subr.bf16.mxu0 0
    %360 = vmatpush1.bf16.msra.mxu0 0
    %361 = vmatprep.subr.bf16.mxu0 0
    %362 = vmatpush1.bf16.msra.mxu0 0
    %363 = vmatprep.subr.bf16.mxu0 0
    %364 = vmatpush1.bf16.msra.mxu0 0
    %365 = vmatprep.subr.bf16.mxu0 0
    %366 = vmatpush1.bf16.msra.mxu0 0
    %367 = vmatprep.subr.bf16.mxu0 0
    %368 = vmatpush1.bf16.msra.mxu0 0
    %369 = vmatprep.subr.bf16.mxu0 0
    %370 = vmatpush1.bf16.msra.mxu0 0
    %371 = vmatprep.subr.bf16.mxu0 0
    %372 = vmatpush1.bf16.msra.mxu0 0
    %373 = vmatprep.subr.bf16.mxu0 0
    %374 = vmatpush1.bf16.msra.mxu0 0
    %375 = vmatprep.mubr.bf16.mxu0 0
    %376 = vmatmul.mubr.bf16.gmra.mrb[0].mxu0 %v128
    %v377 = vpop.f32.mrb[0].mxu0
    %v378 = vadd.f32 %v166, %v377
    %v379 = vpop.f32.mrb[0].mxu0
    %v380 = vadd.f32 %v170, %v379
    %v381 = vpop.f32.mrb[0].mxu0
    %v382 = vpop.f32.mrb[0].mxu0
    %383 = vdwg.mxu0
    %384 = vmatprep.subr.bf16.mxu0 %v282
    %385 = vmatpush1.bf16.msra.mxu0 %v281
    %386 = vmatprep.subr.bf16.mxu0 %v286
    %387 = vmatpush1.bf16.msra.mxu0 %v285
    %388 = vmatprep.subr.bf16.mxu0 %v290
    %389 = vmatpush1.bf16.msra.mxu0 %v289
    %390 = vmatprep.subr.bf16.mxu0 %v294
    %391 = vmatpush1.bf16.msra.mxu0 %v293
    %392 = vmatprep.subr.bf16.mxu0 %v298
    %393 = vmatpush1.bf16.msra.mxu0 %v297
    %394 = vmatprep.subr.bf16.mxu0 %v302
    %395 = vmatpush1.bf16.msra.mxu0 %v301
    %396 = vmatprep.subr.bf16.mxu0 %v306
    %397 = vmatpush1.bf16.msra.mxu0 %v305
    %398 = vmatprep.subr.bf16.mxu0 %v310
    %399 = vmatpush1.bf16.msra.mxu0 %v309
    %400 = vmatprep.subr.bf16.mxu0 0
    %401 = vmatpush1.bf16.msra.mxu0 0
    %402 = vmatprep.subr.bf16.mxu0 0
    %403 = vmatpush1.bf16.msra.mxu0 0
    %404 = vmatprep.subr.bf16.mxu0 0
    %405 = vmatpush1.bf16.msra.mxu0 0
    %406 = vmatprep.subr.bf16.mxu0 0
    %407 = vmatpush1.bf16.msra.mxu0 0
    %408 = vmatprep.subr.bf16.mxu0 0
    %409 = vmatpush1.bf16.msra.mxu0 0
    %410 = vmatprep.subr.bf16.mxu0 0
    %411 = vmatpush1.bf16.msra.mxu0 0
    %412 = vmatprep.subr.bf16.mxu0 0
    %413 = vmatpush1.bf16.msra.mxu0 0
    %414 = vmatprep.subr.bf16.mxu0 0
    %415 = vmatpush1.bf16.msra.mxu0 0
    %416 = vmatprep.mubr.bf16.mxu0 0
    %417 = vmatmul.mubr.bf16.gmra.mrb[0].mxu0 %v128
    %v418 = vpop.f32.mrb[0].mxu0
    %v419 = vadd.f32 %v174, %v418
    %v420 = vpop.f32.mrb[0].mxu0
    %v421 = vadd.f32 %v178, %v420
    %v422 = vpop.f32.mrb[0].mxu0
    %v423 = vpop.f32.mrb[0].mxu0
    %424 = vdwg.mxu0
    %v425 = vmax.f32 %v378, 0.0
    %v426 = vmax.f32 %v380, 0.0
    %v427 = vmax.f32 %v419, 0.0
    %v428 = vmax.f32 %v421, 0.0
    %v429 = vpack.c.bf16 %v425, %v425
    %v430 = vpack.c.bf16 %v426, %v426
    %v431 = vpack.c.bf16 %v427, %v427
    %v432 = vpack.c.bf16 %v428, %v428
    %v433 = vld [vmem:[#allocation5] sm:$0xff]
    %v434 = vld [vmem:[#allocation5 + $0x8] sm:$0xff]
    %v435 = vld [vmem:[#allocation5 + $0x10] sm:$0xff]
    %v436 = vld [vmem:[#allocation5 + $0x18] sm:$0xff]
    %v437 = vld [vmem:[#allocation5 + $0x20] sm:$0xff]
    %v438 = vld [vmem:[#allocation5 + $0x28] sm:$0xff]
    %v439 = vld [vmem:[#allocation5 + $0x30] sm:$0xff]
    %v440 = vld [vmem:[#allocation5 + $0x38] sm:$0xff]
    %v441 = vld [vmem:[#allocation5 + $0x40] sm:$0xff]
    %v442 = vld [vmem:[#allocation5 + $0x48] sm:$0xff]
    %v443 = vld [vmem:[#allocation5 + $0x50] sm:$0xff]
    %v444 = vld [vmem:[#allocation5 + $0x58] sm:$0xff]
    %v445 = vld [vmem:[#allocation5 + $0x60] sm:$0xff]
    %v446 = vld [vmem:[#allocation5 + $0x68] sm:$0xff]
    %v447 = vld [vmem:[#allocation5 + $0x70] sm:$0xff]
    %v448 = vld [vmem:[#allocation5 + $0x78] sm:$0xff]
    %v449 = vld [vmem:[#allocation5 + $0x80] sm:$0xff]
    %v450 = vld [vmem:[#allocation5 + $0x88] sm:$0xff]
    %v451 = vld [vmem:[#allocation5 + $0x90] sm:$0xff]
    %v452 = vld [vmem:[#allocation5 + $0x98] sm:$0xff]
    %v453 = vld [vmem:[#allocation5 + $0xa0] sm:$0xff]
    %v454 = vld [vmem:[#allocation5 + $0xa8] sm:$0xff]
    %v455 = vld [vmem:[#allocation5 + $0xb0] sm:$0xff]
    %v456 = vld [vmem:[#allocation5 + $0xb8] sm:$0xff]
    %v457 = vld [vmem:[#allocation5 + $0xc0] sm:$0xff]
    %v458 = vld [vmem:[#allocation5 + $0xc8] sm:$0xff]
    %v459 = vld [vmem:[#allocation5 + $0xd0] sm:$0xff]
    %v460 = vld [vmem:[#allocation5 + $0xd8] sm:$0xff]
    %v461 = vld [vmem:[#allocation5 + $0xe0] sm:$0xff]
    %v462 = vld [vmem:[#allocation5 + $0xe8] sm:$0xff]
    %v463 = vld [vmem:[#allocation5 + $0xf0] sm:$0xff]
    %v464 = vld [vmem:[#allocation5 + $0xf8] sm:$0xff]
    %v465 = vld [vmem:[#allocation5 + $0x100] sm:$0xff]
    %v466 = vld [vmem:[#allocation5 + $0x108] sm:$0xff]
    %v467 = vld [vmem:[#allocation5 + $0x110] sm:$0xff]
    %v468 = vld [vmem:[#allocation5 + $0x118] sm:$0xff]
    %v469 = vld [vmem:[#allocation5 + $0x120] sm:$0xff]
    %v470 = vld [vmem:[#allocation5 + $0x128] sm:$0xff]
    %v471 = vld [vmem:[#allocation5 + $0x130] sm:$0xff]
    %v472 = vld [vmem:[#allocation5 + $0x138] sm:$0xff]
    %v473 = vld [vmem:[#allocation5 + $0x140] sm:$0xff]
    %v474 = vld [vmem:[#allocation5 + $0x148] sm:$0xff]
    %v475 = vld [vmem:[#allocation5 + $0x150] sm:$0xff]
    %v476 = vld [vmem:[#allocation5 + $0x158] sm:$0xff]
    %v477 = vld [vmem:[#allocation5 + $0x160] sm:$0xff]
    %v478 = vld [vmem:[#allocation5 + $0x168] sm:$0xff]
    %v479 = vld [vmem:[#allocation5 + $0x170] sm:$0xff]
    %v480 = vld [vmem:[#allocation5 + $0x178] sm:$0xff]
    %v481 = vld [vmem:[#allocation5 + $0x180] sm:$0xff]
    %v482 = vld [vmem:[#allocation5 + $0x188] sm:$0xff]
    %v483 = vld [vmem:[#allocation5 + $0x190] sm:$0xff]
    %v484 = vld [vmem:[#allocation5 + $0x198] sm:$0xff]
    %v485 = vld [vmem:[#allocation5 + $0x1a0] sm:$0xff]
    %v486 = vld [vmem:[#allocation5 + $0x1a8] sm:$0xff]
    %v487 = vld [vmem:[#allocation5 + $0x1b0] sm:$0xff]
    %v488 = vld [vmem:[#allocation5 + $0x1b8] sm:$0xff]
    %v489 = vld [vmem:[#allocation5 + $0x1c0] sm:$0xff]
    %v490 = vld [vmem:[#allocation5 + $0x1c8] sm:$0xff]
    %v491 = vld [vmem:[#allocation5 + $0x1d0] sm:$0xff]
    %v492 = vld [vmem:[#allocation5 + $0x1d8] sm:$0xff]
    %v493 = vld [vmem:[#allocation5 + $0x1e0] sm:$0xff]
    %v494 = vld [vmem:[#allocation5 + $0x1e8] sm:$0xff]
    %v495 = vld [vmem:[#allocation5 + $0x1f0] sm:$0xff]
    %v496 = vld [vmem:[#allocation5 + $0x1f8] sm:$0xff]
    %v497 = vld [vmem:[%s4] sm:$0x3]
    %v499 = vlaneseq
    %v500 = vshrl.u32 %v499, 7
    %v501 = vsub.s32 0, %v500
    %v502 = vrot.slane %v497, %v501
    %v503 = vlaneseq
    %v504 = vshrl.u32 %v503, 7
    %v505 = vsub.s32 1, %v504
    %v506 = vrot.slane %v497, %v505
    %v573 = vunpack.c.l.b16 %v433
    %v574 = vunpack.c.h.b16 %v433
    %v575 = vunpack.c.l.b16 %v434
    %v576 = vunpack.c.h.b16 %v434
    %v577 = vunpack.c.l.b16 %v435
    %v578 = vunpack.c.h.b16 %v435
    %v579 = vunpack.c.l.b16 %v436
    %v580 = vunpack.c.h.b16 %v436
    %v581 = vunpack.c.l.b16 %v437
    %v582 = vunpack.c.h.b16 %v437
    %v583 = vunpack.c.l.b16 %v438
    %v584 = vunpack.c.h.b16 %v438
    %v585 = vunpack.c.l.b16 %v439
    %v586 = vunpack.c.h.b16 %v439
    %v587 = vunpack.c.l.b16 %v440
    %v588 = vunpack.c.h.b16 %v440
    %v589 = vunpack.c.l.b16 %v441
    %v590 = vunpack.c.h.b16 %v441
    %v591 = vunpack.c.l.b16 %v442
    %v592 = vunpack.c.h.b16 %v442
    %v593 = vunpack.c.l.b16 %v443
    %v594 = vunpack.c.h.b16 %v443
    %v595 = vunpack.c.l.b16 %v444
    %v596 = vunpack.c.h.b16 %v444
    %v597 = vunpack.c.l.b16 %v445
    %v598 = vunpack.c.h.b16 %v445
    %v599 = vunpack.c.l.b16 %v446
    %v600 = vunpack.c.h.b16 %v446
    %v601 = vunpack.c.l.b16 %v447
    %v602 = vunpack.c.h.b16 %v447
    %v603 = vunpack.c.l.b16 %v448
    %v604 = vunpack.c.h.b16 %v448
    %v605 = vunpack.c.l.b16 %v449
    %v606 = vunpack.c.h.b16 %v449
    %v607 = vunpack.c.l.b16 %v450
    %v608 = vunpack.c.h.b16 %v450
    %v609 = vunpack.c.l.b16 %v451
    %v610 = vunpack.c.h.b16 %v451
    %v611 = vunpack.c.l.b16 %v452
    %v612 = vunpack.c.h.b16 %v452
    %v613 = vunpack.c.l.b16 %v453
    %v614 = vunpack.c.h.b16 %v453
    %v615 = vunpack.c.l.b16 %v454
    %v616 = vunpack.c.h.b16 %v454
    %v617 = vunpack.c.l.b16 %v455
    %v618 = vunpack.c.h.b16 %v455
    %v619 = vunpack.c.l.b16 %v456
    %v620 = vunpack.c.h.b16 %v456
    %v621 = vunpack.c.l.b16 %v457
    %v622 = vunpack.c.h.b16 %v457
    %v623 = vunpack.c.l.b16 %v458
    %v624 = vunpack.c.h.b16 %v458
    %v625 = vunpack.c.l.b16 %v459
    %v626 = vunpack.c.h.b16 %v459
    %v627 = vunpack.c.l.b16 %v460
    %v628 = vunpack.c.h.b16 %v460
    %v629 = vunpack.c.l.b16 %v461
    %v630 = vunpack.c.h.b16 %v461
    %v631 = vunpack.c.l.b16 %v462
    %v632 = vunpack.c.h.b16 %v462
    %v633 = vunpack.c.l.b16 %v463
    %v634 = vunpack.c.h.b16 %v463
    %v635 = vunpack.c.l.b16 %v464
    %v636 = vunpack.c.h.b16 %v464
    %v637 = vunpack.c.l.b16 %v465
    %v638 = vunpack.c.h.b16 %v465
    %v639 = vunpack.c.l.b16 %v466
    %v640 = vunpack.c.h.b16 %v466
    %v641 = vunpack.c.l.b16 %v467
    %v642 = vunpack.c.h.b16 %v467
    %v643 = vunpack.c.l.b16 %v468
    %v644 = vunpack.c.h.b16 %v468
    %v645 = vunpack.c.l.b16 %v469
    %v646 = vunpack.c.h.b16 %v469
    %v647 = vunpack.c.l.b16 %v470
    %v648 = vunpack.c.h.b16 %v470
    %v649 = vunpack.c.l.b16 %v471
    %v650 = vunpack.c.h.b16 %v471
    %v651 = vunpack.c.l.b16 %v472
    %v652 = vunpack.c.h.b16 %v472
    %v653 = vunpack.c.l.b16 %v473
    %v654 = vunpack.c.h.b16 %v473
    %v655 = vunpack.c.l.b16 %v474
    %v656 = vunpack.c.h.b16 %v474
    %v657 = vunpack.c.l.b16 %v475
    %v658 = vunpack.c.h.b16 %v475
    %v659 = vunpack.c.l.b16 %v476
    %v660 = vunpack.c.h.b16 %v476
    %v661 = vunpack.c.l.b16 %v477
    %v662 = vunpack.c.h.b16 %v477
    %v663 = vunpack.c.l.b16 %v478
    %v664 = vunpack.c.h.b16 %v478
    %v665 = vunpack.c.l.b16 %v479
    %v666 = vunpack.c.h.b16 %v479
    %v667 = vunpack.c.l.b16 %v480
    %v668 = vunpack.c.h.b16 %v480
    %v669 = vunpack.c.l.b16 %v481
    %v670 = vunpack.c.h.b16 %v481
    %v671 = vunpack.c.l.b16 %v482
    %v672 = vunpack.c.h.b16 %v482
    %v673 = vunpack.c.l.b16 %v483
    %v674 = vunpack.c.h.b16 %v483
    %v675 = vunpack.c.l.b16 %v484
    %v676 = vunpack.c.h.b16 %v484
    %v677 = vunpack.c.l.b16 %v485
    %v678 = vunpack.c.h.b16 %v485
    %v679 = vunpack.c.l.b16 %v486
    %v680 = vunpack.c.h.b16 %v486
    %v681 = vunpack.c.l.b16 %v487
    %v682 = vunpack.c.h.b16 %v487
    %v683 = vunpack.c.l.b16 %v488
    %v684 = vunpack.c.h.b16 %v488
    %v685 = vunpack.c.l.b16 %v489
    %v686 = vunpack.c.h.b16 %v489
    %v687 = vunpack.c.l.b16 %v490
    %v688 = vunpack.c.h.b16 %v490
    %v689 = vunpack.c.l.b16 %v491
    %v690 = vunpack.c.h.b16 %v491
    %v691 = vunpack.c.l.b16 %v492
    %v692 = vunpack.c.h.b16 %v492
    %v693 = vunpack.c.l.b16 %v493
    %v694 = vunpack.c.h.b16 %v493
    %v695 = vunpack.c.l.b16 %v494
    %v696 = vunpack.c.h.b16 %v494
    %v697 = vunpack.c.l.b16 %v495
    %v698 = vunpack.c.h.b16 %v495
    %v699 = vunpack.c.l.b16 %v496
    %v700 = vunpack.c.h.b16 %v496
    %v701 = vpack.c.b16 %v575, %v573
    %v702 = vpack.c.b16 %v576, %v574
    %v703 = vpack.c.b16 %v579, %v577
    %v704 = vpack.c.b16 %v580, %v578
    %v705 = vpack.c.b16 %v583, %v581
    %v706 = vpack.c.b16 %v584, %v582
    %v707 = vpack.c.b16 %v587, %v585
    %v708 = vpack.c.b16 %v588, %v586
    %v709 = vpack.c.b16 %v591, %v589
    %v710 = vpack.c.b16 %v592, %v590
    %v711 = vpack.c.b16 %v595, %v593
    %v712 = vpack.c.b16 %v596, %v594
    %v713 = vpack.c.b16 %v599, %v597
    %v714 = vpack.c.b16 %v600, %v598
    %v715 = vpack.c.b16 %v603, %v601
    %v716 = vpack.c.b16 %v604, %v602
    %v717 = vpack.c.b16 %v607, %v605
    %v718 = vpack.c.b16 %v608, %v606
    %v719 = vpack.c.b16 %v611, %v609
    %v720 = vpack.c.b16 %v612, %v610
    %v721 = vpack.c.b16 %v615, %v613
    %v722 = vpack.c.b16 %v616, %v614
    %v723 = vpack.c.b16 %v619, %v617
    %v724 = vpack.c.b16 %v620, %v618
    %v725 = vpack.c.b16 %v623, %v621
    %v726 = vpack.c.b16 %v624, %v622
    %v727 = vpack.c.b16 %v627, %v625
    %v728 = vpack.c.b16 %v628, %v626
    %v729 = vpack.c.b16 %v631, %v629
    %v730 = vpack.c.b16 %v632, %v630
    %v731 = vpack.c.b16 %v635, %v633
    %v732 = vpack.c.b16 %v636, %v634
    %v733 = vpack.c.b16 %v639, %v637
    %v734 = vpack.c.b16 %v640, %v638
    %v735 = vpack.c.b16 %v643, %v641
    %v736 = vpack.c.b16 %v644, %v642
    %v737 = vpack.c.b16 %v647, %v645
    %v738 = vpack.c.b16 %v648, %v646
    %v739 = vpack.c.b16 %v651, %v649
    %v740 = vpack.c.b16 %v652, %v650
    %v741 = vpack.c.b16 %v655, %v653
    %v742 = vpack.c.b16 %v656, %v654
    %v743 = vpack.c.b16 %v659, %v657
    %v744 = vpack.c.b16 %v660, %v658
    %v745 = vpack.c.b16 %v663, %v661
    %v746 = vpack.c.b16 %v664, %v662
    %v747 = vpack.c.b16 %v667, %v665
    %v748 = vpack.c.b16 %v668, %v666
    %v749 = vpack.c.b16 %v671, %v669
    %v750 = vpack.c.b16 %v672, %v670
    %v751 = vpack.c.b16 %v675, %v673
    %v752 = vpack.c.b16 %v676, %v674
    %v753 = vpack.c.b16 %v679, %v677
    %v754 = vpack.c.b16 %v680, %v678
    %v755 = vpack.c.b16 %v683, %v681
    %v756 = vpack.c.b16 %v684, %v682
    %v757 = vpack.c.b16 %v687, %v685
    %v758 = vpack.c.b16 %v688, %v686
    %v759 = vpack.c.b16 %v691, %v689
    %v760 = vpack.c.b16 %v692, %v690
    %v761 = vpack.c.b16 %v695, %v693
    %v762 = vpack.c.b16 %v696, %v694
    %v763 = vpack.c.b16 %v699, %v697
    %v764 = vpack.c.b16 %v700, %v698
    %829 = vmatprep.subr.bf16.mxu0 %v702
    %830 = vmatpush1.bf16.msra.mxu0 %v701
    %831 = vmatprep.subr.bf16.mxu0 %v704
    %832 = vmatpush1.bf16.msra.mxu0 %v703
    %833 = vmatprep.subr.bf16.mxu0 %v706
    %834 = vmatpush1.bf16.msra.mxu0 %v705
    %835 = vmatprep.subr.bf16.mxu0 %v708
    %836 = vmatpush1.bf16.msra.mxu0 %v707
    %837 = vmatprep.subr.bf16.mxu0 %v710
    %838 = vmatpush1.bf16.msra.mxu0 %v709
    %839 = vmatprep.subr.bf16.mxu0 %v712
    %840 = vmatpush1.bf16.msra.mxu0 %v711
    %841 = vmatprep.subr.bf16.mxu0 %v714
    %842 = vmatpush1.bf16.msra.mxu0 %v713
    %843 = vmatprep.subr.bf16.mxu0 %v716
    %844 = vmatpush1.bf16.msra.mxu0 %v715
    %845 = vmatprep.subr.bf16.mxu0 %v718
    %846 = vmatpush1.bf16.msra.mxu0 %v717
    %847 = vmatprep.subr.bf16.mxu0 %v720
    %848 = vmatpush1.bf16.msra.mxu0 %v719
    %849 = vmatprep.subr.bf16.mxu0 %v722
    %850 = vmatpush1.bf16.msra.mxu0 %v721
    %851 = vmatprep.subr.bf16.mxu0 %v724
    %852 = vmatpush1.bf16.msra.mxu0 %v723
    %853 = vmatprep.subr.bf16.mxu0 %v726
    %854 = vmatpush1.bf16.msra.mxu0 %v725
    %855 = vmatprep.subr.bf16.mxu0 %v728
    %856 = vmatpush1.bf16.msra.mxu0 %v727
    %857 = vmatprep.subr.bf16.mxu0 %v730
    %858 = vmatpush1.bf16.msra.mxu0 %v729
    %859 = vmatprep.subr.bf16.mxu0 %v732
    %860 = vmatpush1.bf16.msra.mxu0 %v731
    %861 = vmatprep.mubr.bf16.mxu0 %v430
    %862 = vmatmul.mubr.bf16.gmra.mrb[0].mxu0 %v429
    %v863 = vpop.f32.mrb[0].mxu0
    %v864 = vadd.f32 %v502, %v863
    %v865 = vpop.f32.mrb[0].mxu0
    %v866 = vadd.f32 %v506, %v865
    %v867 = vpop.f32.mrb[0].mxu0
    %v868 = vpop.f32.mrb[0].mxu0
    %869 = vdwg.mxu0
    %870 = vmatprep.subr.bf16.mxu0 %v734
    %871 = vmatpush1.bf16.msra.mxu0 %v733
    %872 = vmatprep.subr.bf16.mxu0 %v736
    %873 = vmatpush1.bf16.msra.mxu0 %v735
    %874 = vmatprep.subr.bf16.mxu0 %v738
    %875 = vmatpush1.bf16.msra.mxu0 %v737
    %876 = vmatprep.subr.bf16.mxu0 %v740
    %877 = vmatpush1.bf16.msra.mxu0 %v739
    %878 = vmatprep.subr.bf16.mxu0 %v742
    %879 = vmatpush1.bf16.msra.mxu0 %v741
    %880 = vmatprep.subr.bf16.mxu0 %v744
    %881 = vmatpush1.bf16.msra.mxu0 %v743
    %882 = vmatprep.subr.bf16.mxu0 %v746
    %883 = vmatpush1.bf16.msra.mxu0 %v745
    %884 = vmatprep.subr.bf16.mxu0 %v748
    %885 = vmatpush1.bf16.msra.mxu0 %v747
    %886 = vmatprep.subr.bf16.mxu0 %v750
    %887 = vmatpush1.bf16.msra.mxu0 %v749
    %888 = vmatprep.subr.bf16.mxu0 %v752
    %889 = vmatpush1.bf16.msra.mxu0 %v751
    %890 = vmatprep.subr.bf16.mxu0 %v754
    %891 = vmatpush1.bf16.msra.mxu0 %v753
    %892 = vmatprep.subr.bf16.mxu0 %v756
    %893 = vmatpush1.bf16.msra.mxu0 %v755
    %894 = vmatprep.subr.bf16.mxu0 %v758
    %895 = vmatpush1.bf16.msra.mxu0 %v757
    %896 = vmatprep.subr.bf16.mxu0 %v760
    %897 = vmatpush1.bf16.msra.mxu0 %v759
    %898 = vmatprep.subr.bf16.mxu0 %v762
    %899 = vmatpush1.bf16.msra.mxu0 %v761
    %900 = vmatprep.subr.bf16.mxu0 %v764
    %901 = vmatpush1.bf16.msra.mxu0 %v763
    %902 = vmatprep.mubr.bf16.mxu0 %v432
    %903 = vmatmul.mubr.bf16.gmra.mrb[0].mxu0 %v431
    %v904 = vpop.f32.mrb[0].mxu0
    %v905 = vadd.f32 %v864, %v904
    %v906 = vpop.f32.mrb[0].mxu0
    %v907 = vadd.f32 %v866, %v906
    %v908 = vpop.f32.mrb[0].mxu0
    %v909 = vpop.f32.mrb[0].mxu0
    %910 = vdwg.mxu0
    %v911 = vmax.f32 %v905, 0.0
    %v912 = vmax.f32 %v907, 0.0
    %v913 = vpack.c.bf16 %v911, %v911
    %v914 = vpack.c.bf16 %v912, %v912
    %v915 = vld [vmem:[#allocation7] sm:$0xf]
    %v916 = vld [vmem:[#allocation7 + $0x4] sm:$0xf]
    %v917 = vld [vmem:[#allocation7 + $0x8] sm:$0xf]
    %v918 = vld [vmem:[#allocation7 + $0xc] sm:$0xf]
    %v919 = vld [vmem:[#allocation7 + $0x10] sm:$0xf]
    %v920 = vld [vmem:[#allocation7 + $0x14] sm:$0xf]
    %v921 = vld [vmem:[#allocation7 + $0x18] sm:$0xf]
    %v922 = vld [vmem:[#allocation7 + $0x1c] sm:$0xf]
    %v923 = vld [vmem:[#allocation7 + $0x20] sm:$0xf]
    %v924 = vld [vmem:[#allocation7 + $0x24] sm:$0xf]
    %v925 = vld [vmem:[#allocation7 + $0x28] sm:$0xf]
    %v926 = vld [vmem:[#allocation7 + $0x2c] sm:$0xf]
    %v927 = vld [vmem:[#allocation7 + $0x30] sm:$0xf]
    %v928 = vld [vmem:[#allocation7 + $0x34] sm:$0xf]
    %v929 = vld [vmem:[#allocation7 + $0x38] sm:$0xf]
    %v930 = vld [vmem:[#allocation7 + $0x3c] sm:$0xf]
    %v931 = vld [vmem:[#allocation7 + $0x40] sm:$0xf]
    %v932 = vld [vmem:[#allocation7 + $0x44] sm:$0xf]
    %v933 = vld [vmem:[#allocation7 + $0x48] sm:$0xf]
    %v934 = vld [vmem:[#allocation7 + $0x4c] sm:$0xf]
    %v935 = vld [vmem:[#allocation7 + $0x50] sm:$0xf]
    %v936 = vld [vmem:[#allocation7 + $0x54] sm:$0xf]
    %v937 = vld [vmem:[#allocation7 + $0x58] sm:$0xf]
    %v938 = vld [vmem:[#allocation7 + $0x5c] sm:$0xf]
    %v939 = vld [vmem:[#allocation7 + $0x60] sm:$0xf]
    %v940 = vld [vmem:[#allocation7 + $0x64] sm:$0xf]
    %v941 = vld [vmem:[#allocation7 + $0x68] sm:$0xf]
    %v942 = vld [vmem:[#allocation7 + $0x6c] sm:$0xf]
    %v943 = vld [vmem:[#allocation7 + $0x70] sm:$0xf]
    %v944 = vld [vmem:[#allocation7 + $0x74] sm:$0xf]
    %v945 = vld [vmem:[#allocation7 + $0x78] sm:$0xf]
    %v946 = vld [vmem:[#allocation7 + $0x7c] sm:$0xf]
    %v947 = vld [vmem:[%s6] sm:$0x1]
    %v949 = vlaneseq
    %v950 = vshrl.u32 %v949, 7
    %v951 = vsub.s32 0, %v950
    %v952 = vrot.slane %v947, %v951
    %v986 = vunpack.c.l.b16 %v915
    %v987 = vunpack.c.l.b16 %v916
    %v988 = vunpack.c.l.b16 %v917
    %v989 = vunpack.c.l.b16 %v918
    %v990 = vunpack.c.l.b16 %v919
    %v991 = vunpack.c.l.b16 %v920
    %v992 = vunpack.c.l.b16 %v921
    %v993 = vunpack.c.l.b16 %v922
    %v994 = vunpack.c.l.b16 %v923
    %v995 = vunpack.c.l.b16 %v924
    %v996 = vunpack.c.l.b16 %v925
    %v997 = vunpack.c.l.b16 %v926
    %v998 = vunpack.c.l.b16 %v927
    %v999 = vunpack.c.l.b16 %v928
    %v1000 = vunpack.c.l.b16 %v929
    %v1001 = vunpack.c.l.b16 %v930
    %v1002 = vunpack.c.l.b16 %v931
    %v1003 = vunpack.c.l.b16 %v932
    %v1004 = vunpack.c.l.b16 %v933
    %v1005 = vunpack.c.l.b16 %v934
    %v1006 = vunpack.c.l.b16 %v935
    %v1007 = vunpack.c.l.b16 %v936
    %v1008 = vunpack.c.l.b16 %v937
    %v1009 = vunpack.c.l.b16 %v938
    %v1010 = vunpack.c.l.b16 %v939
    %v1011 = vunpack.c.l.b16 %v940
    %v1012 = vunpack.c.l.b16 %v941
    %v1013 = vunpack.c.l.b16 %v942
    %v1014 = vunpack.c.l.b16 %v943
    %v1015 = vunpack.c.l.b16 %v944
    %v1016 = vunpack.c.l.b16 %v945
    %v1017 = vunpack.c.l.b16 %v946
    %v1018 = vpack.c.b16 %v987, %v986
    %v1019 = vpack.c.b16 %v989, %v988
    %v1020 = vpack.c.b16 %v991, %v990
    %v1021 = vpack.c.b16 %v993, %v992
    %v1022 = vpack.c.b16 %v995, %v994
    %v1023 = vpack.c.b16 %v997, %v996
    %v1024 = vpack.c.b16 %v999, %v998
    %v1025 = vpack.c.b16 %v1001, %v1000
    %v1026 = vpack.c.b16 %v1003, %v1002
    %v1027 = vpack.c.b16 %v1005, %v1004
    %v1028 = vpack.c.b16 %v1007, %v1006
    %v1029 = vpack.c.b16 %v1009, %v1008
    %v1030 = vpack.c.b16 %v1011, %v1010
    %v1031 = vpack.c.b16 %v1013, %v1012
    %v1032 = vpack.c.b16 %v1015, %v1014
    %v1033 = vpack.c.b16 %v1017, %v1016
    %1050 = vmatprep.subr.bf16.mxu0 0
    %1051 = vmatpush1.bf16.msra.mxu0 %v1018
    %1052 = vmatprep.subr.bf16.mxu0 0
    %1053 = vmatpush1.bf16.msra.mxu0 %v1019
    %1054 = vmatprep.subr.bf16.mxu0 0
    %1055 = vmatpush1.bf16.msra.mxu0 %v1020
    %1056 = vmatprep.subr.bf16.mxu0 0
    %1057 = vmatpush1.bf16.msra.mxu0 %v1021
    %1058 = vmatprep.subr.bf16.mxu0 0
    %1059 = vmatpush1.bf16.msra.mxu0 %v1022
    %1060 = vmatprep.subr.bf16.mxu0 0
    %1061 = vmatpush1.bf16.msra.mxu0 %v1023
    %1062 = vmatprep.subr.bf16.mxu0 0
    %1063 = vmatpush1.bf16.msra.mxu0 %v1024
    %1064 = vmatprep.subr.bf16.mxu0 0
    %1065 = vmatpush1.bf16.msra.mxu0 %v1025
    %1066 = vmatprep.subr.bf16.mxu0 0
    %1067 = vmatpush1.bf16.msra.mxu0 %v1026
    %1068 = vmatprep.subr.bf16.mxu0 0
    %1069 = vmatpush1.bf16.msra.mxu0 %v1027
    %1070 = vmatprep.subr.bf16.mxu0 0
    %1071 = vmatpush1.bf16.msra.mxu0 %v1028
    %1072 = vmatprep.subr.bf16.mxu0 0
    %1073 = vmatpush1.bf16.msra.mxu0 %v1029
    %1074 = vmatprep.subr.bf16.mxu0 0
    %1075 = vmatpush1.bf16.msra.mxu0 %v1030
    %1076 = vmatprep.subr.bf16.mxu0 0
    %1077 = vmatpush1.bf16.msra.mxu0 %v1031
    %1078 = vmatprep.subr.bf16.mxu0 0
    %1079 = vmatpush1.bf16.msra.mxu0 %v1032
    %1080 = vmatprep.subr.bf16.mxu0 0
    %1081 = vmatpush1.bf16.msra.mxu0 %v1033
    %1082 = vmatprep.mubr.bf16.mxu0 %v914
    %1083 = vmatmul.mubr.bf16.gmra.mrb[0].mxu0 %v913
    %v1084 = vpop.f32.mrb[0].mxu0
    %v1085 = vadd.f32 %v952, %v1084
    %v1086 = vpop.f32.mrb[0].mxu0
    %v1087 = vpop.f32.mrb[0].mxu0
    %v1088 = vpop.f32.mrb[0].mxu0
    %1089 = vdwg.mxu0
    %v1090 = vpack.c.bf16 %v1085, %v1085
    %v1091 = vld [vmem:[#allocation8] sm:$0xff]
    %v1092 = vld [vmem:[#allocation8 + $0x8] sm:$0xff]
    %v1093 = vld [vmem:[#allocation8 + $0x10] sm:$0xff]
    %v1094 = vld [vmem:[#allocation8 + $0x18] sm:$0xff]
    %v1095 = vld [vmem:[#allocation8 + $0x20] sm:$0xff]
    %v1096 = vld [vmem:[#allocation8 + $0x28] sm:$0xff]
    %v1097 = vld [vmem:[#allocation8 + $0x30] sm:$0xff]
    %v1098 = vld [vmem:[#allocation8 + $0x38] sm:$0xff]
    %v1099 = vld [vmem:[#allocation8 + $0x40] sm:$0xff]
    %v1100 = vld [vmem:[#allocation8 + $0x48] sm:$0xff]
    %v1101 = vld [vmem:[#allocation8 + $0x50] sm:$0xff]
    %v1102 = vld [vmem:[#allocation8 + $0x58] sm:$0xff]
    %v1103 = vld [vmem:[#allocation8 + $0x60] sm:$0xff]
    %v1104 = vld [vmem:[#allocation8 + $0x68] sm:$0xff]
    %v1105 = vld [vmem:[#allocation8 + $0x70] sm:$0xff]
    %v1106 = vld [vmem:[#allocation8 + $0x78] sm:$0xff]
    %v1107 = vld [vmem:[%s8] sm:$0x3]
    %v1109 = vlaneseq
    %v1110 = vshrl.u32 %v1109, 7
    %v1111 = vsub.s32 0, %v1110
    %v1112 = vrot.slane %v1107, %v1111
    %v1113 = vlaneseq
    %v1114 = vshrl.u32 %v1113, 7
    %v1115 = vsub.s32 1, %v1114
    %v1116 = vrot.slane %v1107, %v1115
    %v1135 = vunpack.c.l.b16 %v1091
    %v1136 = vunpack.c.h.b16 %v1091
    %v1137 = vunpack.c.l.b16 %v1092
    %v1138 = vunpack.c.h.b16 %v1092
    %v1139 = vunpack.c.l.b16 %v1093
    %v1140 = vunpack.c.h.b16 %v1093
    %v1141 = vunpack.c.l.b16 %v1094
    %v1142 = vunpack.c.h.b16 %v1094
    %v1143 = vunpack.c.l.b16 %v1095
    %v1144 = vunpack.c.h.b16 %v1095
    %v1145 = vunpack.c.l.b16 %v1096
    %v1146 = vunpack.c.h.b16 %v1096
    %v1147 = vunpack.c.l.b16 %v1097
    %v1148 = vunpack.c.h.b16 %v1097
    %v1149 = vunpack.c.l.b16 %v1098
    %v1150 = vunpack.c.h.b16 %v1098
    %v1151 = vunpack.c.l.b16 %v1099
    %v1152 = vunpack.c.h.b16 %v1099
    %v1153 = vunpack.c.l.b16 %v1100
    %v1154 = vunpack.c.h.b16 %v1100
    %v1155 = vunpack.c.l.b16 %v1101
    %v1156 = vunpack.c.h.b16 %v1101
    %v1157 = vunpack.c.l.b16 %v1102
    %v1158 = vunpack.c.h.b16 %v1102
    %v1159 = vunpack.c.l.b16 %v1103
    %v1160 = vunpack.c.h.b16 %v1103
    %v1161 = vunpack.c.l.b16 %v1104
    %v1162 = vunpack.c.h.b16 %v1104
    %v1163 = vunpack.c.l.b16 %v1105
    %v1164 = vunpack.c.h.b16 %v1105
    %v1165 = vunpack.c.l.b16 %v1106
    %v1166 = vunpack.c.h.b16 %v1106
    %v1167 = vpack.c.b16 %v1137, %v1135
    %v1168 = vpack.c.b16 %v1138, %v1136
    %v1169 = vpack.c.b16 %v1141, %v1139
    %v1170 = vpack.c.b16 %v1142, %v1140
    %v1171 = vpack.c.b16 %v1145, %v1143
    %v1172 = vpack.c.b16 %v1146, %v1144
    %v1173 = vpack.c.b16 %v1149, %v1147
    %v1174 = vpack.c.b16 %v1150, %v1148
    %v1175 = vpack.c.b16 %v1153, %v1151
    %v1176 = vpack.c.b16 %v1154, %v1152
    %v1177 = vpack.c.b16 %v1157, %v1155
    %v1178 = vpack.c.b16 %v1158, %v1156
    %v1179 = vpack.c.b16 %v1161, %v1159
    %v1180 = vpack.c.b16 %v1162, %v1160
    %v1181 = vpack.c.b16 %v1165, %v1163
    %v1182 = vpack.c.b16 %v1166, %v1164
    %1199 = vmatprep.subr.bf16.mxu0 %v1168
    %1200 = vmatpush1.bf16.msra.mxu0 %v1167
    %1201 = vmatprep.subr.bf16.mxu0 %v1170
    %1202 = vmatpush1.bf16.msra.mxu0 %v1169
    %1203 = vmatprep.subr.bf16.mxu0 %v1172
    %1204 = vmatpush1.bf16.msra.mxu0 %v1171
    %1205 = vmatprep.subr.bf16.mxu0 %v1174
    %1206 = vmatpush1.bf16.msra.mxu0 %v1173
    %1207 = vmatprep.subr.bf16.mxu0 %v1176
    %1208 = vmatpush1.bf16.msra.mxu0 %v1175
    %1209 = vmatprep.subr.bf16.mxu0 %v1178
    %1210 = vmatpush1.bf16.msra.mxu0 %v1177
    %1211 = vmatprep.subr.bf16.mxu0 %v1180
    %1212 = vmatpush1.bf16.msra.mxu0 %v1179
    %1213 = vmatprep.subr.bf16.mxu0 %v1182
    %1214 = vmatpush1.bf16.msra.mxu0 %v1181
    %1215 = vmatprep.subr.bf16.mxu0 0
    %1216 = vmatpush1.bf16.msra.mxu0 0
    %1217 = vmatprep.subr.bf16.mxu0 0
    %1218 = vmatpush1.bf16.msra.mxu0 0
    %1219 = vmatprep.subr.bf16.mxu0 0
    %1220 = vmatpush1.bf16.msra.mxu0 0
    %1221 = vmatprep.subr.bf16.mxu0 0
    %1222 = vmatpush1.bf16.msra.mxu0 0
    %1223 = vmatprep.subr.bf16.mxu0 0
    %1224 = vmatpush1.bf16.msra.mxu0 0
    %1225 = vmatprep.subr.bf16.mxu0 0
    %1226 = vmatpush1.bf16.msra.mxu0 0
    %1227 = vmatprep.subr.bf16.mxu0 0
    %1228 = vmatpush1.bf16.msra.mxu0 0
    %1229 = vmatprep.subr.bf16.mxu0 0
    %1230 = vmatpush1.bf16.msra.mxu0 0
    %1231 = vmatprep.mubr.bf16.mxu0 0
    %1232 = vmatmul.mubr.bf16.gmra.mrb[0].mxu0 %v1090
    %v1233 = vpop.f32.mrb[0].mxu0
    %v1234 = vadd.f32 %v1112, %v1233
    %v1235 = vpop.f32.mrb[0].mxu0
    %v1236 = vadd.f32 %v1116, %v1235
    %v1237 = vpop.f32.mrb[0].mxu0
    %v1238 = vpop.f32.mrb[0].mxu0
    %1239 = vdwg.mxu0
    %v1240 = vmax.f32 %v1234, 0.0
    %v1241 = vmax.f32 %v1236, 0.0
    %v1242 = vpack.c.bf16 %v1240, %v1240
    %v1243 = vpack.c.bf16 %v1241, %v1241
    %v1244 = vld [vmem:[#allocation10] sm:$0xff]
    %v1245 = vld [vmem:[#allocation10 + $0x8] sm:$0xf]
    %v1246 = vld [vmem:[#allocation10 + $0xc] sm:$0xff]
    %v1247 = vld [vmem:[#allocation10 + $0x14] sm:$0xf]
    %v1248 = vld [vmem:[#allocation10 + $0x18] sm:$0xff]
    %v1249 = vld [vmem:[#allocation10 + $0x20] sm:$0xf]
    %v1250 = vld [vmem:[#allocation10 + $0x24] sm:$0xff]
    %v1251 = vld [vmem:[#allocation10 + $0x2c] sm:$0xf]
    %v1252 = vld [vmem:[#allocation10 + $0x30] sm:$0xff]
    %v1253 = vld [vmem:[#allocation10 + $0x38] sm:$0xf]
    %v1254 = vld [vmem:[#allocation10 + $0x3c] sm:$0xff]
    %v1255 = vld [vmem:[#allocation10 + $0x44] sm:$0xf]
    %v1256 = vld [vmem:[#allocation10 + $0x48] sm:$0xff]
    %v1257 = vld [vmem:[#allocation10 + $0x50] sm:$0xf]
    %v1258 = vld [vmem:[#allocation10 + $0x54] sm:$0xff]
    %v1259 = vld [vmem:[#allocation10 + $0x5c] sm:$0xf]
    %v1260 = vld [vmem:[#allocation10 + $0x60] sm:$0xff]
    %v1261 = vld [vmem:[#allocation10 + $0x68] sm:$0xf]
    %v1262 = vld [vmem:[#allocation10 + $0x6c] sm:$0xff]
    %v1263 = vld [vmem:[#allocation10 + $0x74] sm:$0xf]
    %v1264 = vld [vmem:[#allocation10 + $0x78] sm:$0xff]
    %v1265 = vld [vmem:[#allocation10 + $0x80] sm:$0xf]
    %v1266 = vld [vmem:[#allocation10 + $0x84] sm:$0xff]
    %v1267 = vld [vmem:[#allocation10 + $0x8c] sm:$0xf]
    %v1268 = vld [vmem:[#allocation10 + $0x90] sm:$0xff]
    %v1269 = vld [vmem:[#allocation10 + $0x98] sm:$0xf]
    %v1270 = vld [vmem:[#allocation10 + $0x9c] sm:$0xff]
    %v1271 = vld [vmem:[#allocation10 + $0xa4] sm:$0xf]
    %v1272 = vld [vmem:[#allocation10 + $0xa8] sm:$0xff]
    %v1273 = vld [vmem:[#allocation10 + $0xb0] sm:$0xf]
    %v1274 = vld [vmem:[#allocation10 + $0xb4] sm:$0xff]
    %v1275 = vld [vmem:[#allocation10 + $0xbc] sm:$0xf]
    %v1276 = vld [vmem:[#allocation10 + $0xc0] sm:$0xff]
    %v1277 = vld [vmem:[#allocation10 + $0xc8] sm:$0xf]
    %v1278 = vld [vmem:[#allocation10 + $0xcc] sm:$0xff]
    %v1279 = vld [vmem:[#allocation10 + $0xd4] sm:$0xf]
    %v1280 = vld [vmem:[#allocation10 + $0xd8] sm:$0xff]
    %v1281 = vld [vmem:[#allocation10 + $0xe0] sm:$0xf]
    %v1282 = vld [vmem:[#allocation10 + $0xe4] sm:$0xff]
    %v1283 = vld [vmem:[#allocation10 + $0xec] sm:$0xf]
    %v1284 = vld [vmem:[#allocation10 + $0xf0] sm:$0xff]
    %v1285 = vld [vmem:[#allocation10 + $0xf8] sm:$0xf]
    %v1286 = vld [vmem:[#allocation10 + $0xfc] sm:$0xff]
    %v1287 = vld [vmem:[#allocation10 + $0x104] sm:$0xf]
    %v1288 = vld [vmem:[#allocation10 + $0x108] sm:$0xff]
    %v1289 = vld [vmem:[#allocation10 + $0x110] sm:$0xf]
    %v1290 = vld [vmem:[#allocation10 + $0x114] sm:$0xff]
    %v1291 = vld [vmem:[#allocation10 + $0x11c] sm:$0xf]
    %v1292 = vld [vmem:[#allocation10 + $0x120] sm:$0xff]
    %v1293 = vld [vmem:[#allocation10 + $0x128] sm:$0xf]
    %v1294 = vld [vmem:[#allocation10 + $0x12c] sm:$0xff]
    %v1295 = vld [vmem:[#allocation10 + $0x134] sm:$0xf]
    %v1296 = vld [vmem:[#allocation10 + $0x138] sm:$0xff]
    %v1297 = vld [vmem:[#allocation10 + $0x140] sm:$0xf]
    %v1298 = vld [vmem:[#allocation10 + $0x144] sm:$0xff]
    %v1299 = vld [vmem:[#allocation10 + $0x14c] sm:$0xf]
    %v1300 = vld [vmem:[#allocation10 + $0x150] sm:$0xff]
    %v1301 = vld [vmem:[#allocation10 + $0x158] sm:$0xf]
    %v1302 = vld [vmem:[#allocation10 + $0x15c] sm:$0xff]
    %v1303 = vld [vmem:[#allocation10 + $0x164] sm:$0xf]
    %v1304 = vld [vmem:[#allocation10 + $0x168] sm:$0xff]
    %v1305 = vld [vmem:[#allocation10 + $0x170] sm:$0xf]
    %v1306 = vld [vmem:[#allocation10 + $0x174] sm:$0xff]
    %v1307 = vld [vmem:[#allocation10 + $0x17c] sm:$0xf]
    %v1308 = vld [vmem:[%s10] sm:$0x7]
    %v1310 = vlaneseq
    %v1311 = vshrl.u32 %v1310, 7
    %v1312 = vsub.s32 0, %v1311
    %v1313 = vrot.slane %v1308, %v1312
    %v1314 = vlaneseq
    %v1315 = vshrl.u32 %v1314, 7
    %v1316 = vsub.s32 1, %v1315
    %v1317 = vrot.slane %v1308, %v1316
    %v1318 = vlaneseq
    %v1319 = vshrl.u32 %v1318, 7
    %v1320 = vsub.s32 2, %v1319
    %v1321 = vrot.slane %v1308, %v1320
    %v1389 = vunpack.c.l.b16 %v1244
    %v1390 = vunpack.c.h.b16 %v1244
    %v1391 = vunpack.c.l.b16 %v1245
    %v1392 = vunpack.c.l.b16 %v1246
    %v1393 = vunpack.c.h.b16 %v1246
    %v1394 = vunpack.c.l.b16 %v1247
    %v1395 = vunpack.c.l.b16 %v1248
    %v1396 = vunpack.c.h.b16 %v1248
    %v1397 = vunpack.c.l.b16 %v1249
    %v1398 = vunpack.c.l.b16 %v1250
    %v1399 = vunpack.c.h.b16 %v1250
    %v1400 = vunpack.c.l.b16 %v1251
    %v1401 = vunpack.c.l.b16 %v1252
    %v1402 = vunpack.c.h.b16 %v1252
    %v1403 = vunpack.c.l.b16 %v1253
    %v1404 = vunpack.c.l.b16 %v1254
    %v1405 = vunpack.c.h.b16 %v1254
    %v1406 = vunpack.c.l.b16 %v1255
    %v1407 = vunpack.c.l.b16 %v1256
    %v1408 = vunpack.c.h.b16 %v1256
    %v1409 = vunpack.c.l.b16 %v1257
    %v1410 = vunpack.c.l.b16 %v1258
    %v1411 = vunpack.c.h.b16 %v1258
    %v1412 = vunpack.c.l.b16 %v1259
    %v1413 = vunpack.c.l.b16 %v1260
    %v1414 = vunpack.c.h.b16 %v1260
    %v1415 = vunpack.c.l.b16 %v1261
    %v1416 = vunpack.c.l.b16 %v1262
    %v1417 = vunpack.c.h.b16 %v1262
    %v1418 = vunpack.c.l.b16 %v1263
    %v1419 = vunpack.c.l.b16 %v1264
    %v1420 = vunpack.c.h.b16 %v1264
    %v1421 = vunpack.c.l.b16 %v1265
    %v1422 = vunpack.c.l.b16 %v1266
    %v1423 = vunpack.c.h.b16 %v1266
    %v1424 = vunpack.c.l.b16 %v1267
    %v1425 = vunpack.c.l.b16 %v1268
    %v1426 = vunpack.c.h.b16 %v1268
    %v1427 = vunpack.c.l.b16 %v1269
    %v1428 = vunpack.c.l.b16 %v1270
    %v1429 = vunpack.c.h.b16 %v1270
    %v1430 = vunpack.c.l.b16 %v1271
    %v1431 = vunpack.c.l.b16 %v1272
    %v1432 = vunpack.c.h.b16 %v1272
    %v1433 = vunpack.c.l.b16 %v1273
    %v1434 = vunpack.c.l.b16 %v1274
    %v1435 = vunpack.c.h.b16 %v1274
    %v1436 = vunpack.c.l.b16 %v1275
    %v1437 = vunpack.c.l.b16 %v1276
    %v1438 = vunpack.c.h.b16 %v1276
    %v1439 = vunpack.c.l.b16 %v1277
    %v1440 = vunpack.c.l.b16 %v1278
    %v1441 = vunpack.c.h.b16 %v1278
    %v1442 = vunpack.c.l.b16 %v1279
    %v1443 = vunpack.c.l.b16 %v1280
    %v1444 = vunpack.c.h.b16 %v1280
    %v1445 = vunpack.c.l.b16 %v1281
    %v1446 = vunpack.c.l.b16 %v1282
    %v1447 = vunpack.c.h.b16 %v1282
    %v1448 = vunpack.c.l.b16 %v1283
    %v1449 = vunpack.c.l.b16 %v1284
    %v1450 = vunpack.c.h.b16 %v1284
    %v1451 = vunpack.c.l.b16 %v1285
    %v1452 = vunpack.c.l.b16 %v1286
    %v1453 = vunpack.c.h.b16 %v1286
    %v1454 = vunpack.c.l.b16 %v1287
    %v1455 = vunpack.c.l.b16 %v1288
    %v1456 = vunpack.c.h.b16 %v1288
    %v1457 = vunpack.c.l.b16 %v1289
    %v1458 = vunpack.c.l.b16 %v1290
    %v1459 = vunpack.c.h.b16 %v1290
    %v1460 = vunpack.c.l.b16 %v1291
    %v1461 = vunpack.c.l.b16 %v1292
    %v1462 = vunpack.c.h.b16 %v1292
    %v1463 = vunpack.c.l.b16 %v1293
    %v1464 = vunpack.c.l.b16 %v1294
    %v1465 = vunpack.c.h.b16 %v1294
    %v1466 = vunpack.c.l.b16 %v1295
    %v1467 = vunpack.c.l.b16 %v1296
    %v1468 = vunpack.c.h.b16 %v1296
    %v1469 = vunpack.c.l.b16 %v1297
    %v1470 = vunpack.c.l.b16 %v1298
    %v1471 = vunpack.c.h.b16 %v1298
    %v1472 = vunpack.c.l.b16 %v1299
    %v1473 = vunpack.c.l.b16 %v1300
    %v1474 = vunpack.c.h.b16 %v1300
    %v1475 = vunpack.c.l.b16 %v1301
    %v1476 = vunpack.c.l.b16 %v1302
    %v1477 = vunpack.c.h.b16 %v1302
    %v1478 = vunpack.c.l.b16 %v1303
    %v1479 = vunpack.c.l.b16 %v1304
    %v1480 = vunpack.c.h.b16 %v1304
    %v1481 = vunpack.c.l.b16 %v1305
    %v1482 = vunpack.c.l.b16 %v1306
    %v1483 = vunpack.c.h.b16 %v1306
    %v1484 = vunpack.c.l.b16 %v1307
    %v1485 = vpack.c.b16 %v1392, %v1389
    %v1486 = vpack.c.b16 %v1393, %v1390
    %v1487 = vpack.c.b16 %v1394, %v1391
    %v1488 = vpack.c.b16 %v1398, %v1395
    %v1489 = vpack.c.b16 %v1399, %v1396
    %v1490 = vpack.c.b16 %v1400, %v1397
    %v1491 = vpack.c.b16 %v1404, %v1401
    %v1492 = vpack.c.b16 %v1405, %v1402
    %v1493 = vpack.c.b16 %v1406, %v1403
    %v1494 = vpack.c.b16 %v1410, %v1407
    %v1495 = vpack.c.b16 %v1411, %v1408
    %v1496 = vpack.c.b16 %v1412, %v1409
    %v1497 = vpack.c.b16 %v1416, %v1413
    %v1498 = vpack.c.b16 %v1417, %v1414
    %v1499 = vpack.c.b16 %v1418, %v1415
    %v1500 = vpack.c.b16 %v1422, %v1419
    %v1501 = vpack.c.b16 %v1423, %v1420
    %v1502 = vpack.c.b16 %v1424, %v1421
    %v1503 = vpack.c.b16 %v1428, %v1425
    %v1504 = vpack.c.b16 %v1429, %v1426
    %v1505 = vpack.c.b16 %v1430, %v1427
    %v1506 = vpack.c.b16 %v1434, %v1431
    %v1507 = vpack.c.b16 %v1435, %v1432
    %v1508 = vpack.c.b16 %v1436, %v1433
    %v1509 = vpack.c.b16 %v1440, %v1437
    %v1510 = vpack.c.b16 %v1441, %v1438
    %v1511 = vpack.c.b16 %v1442, %v1439
    %v1512 = vpack.c.b16 %v1446, %v1443
    %v1513 = vpack.c.b16 %v1447, %v1444
    %v1514 = vpack.c.b16 %v1448, %v1445
    %v1515 = vpack.c.b16 %v1452, %v1449
    %v1516 = vpack.c.b16 %v1453, %v1450
    %v1517 = vpack.c.b16 %v1454, %v1451
    %v1518 = vpack.c.b16 %v1458, %v1455
    %v1519 = vpack.c.b16 %v1459, %v1456
    %v1520 = vpack.c.b16 %v1460, %v1457
    %v1521 = vpack.c.b16 %v1464, %v1461
    %v1522 = vpack.c.b16 %v1465, %v1462
    %v1523 = vpack.c.b16 %v1466, %v1463
    %v1524 = vpack.c.b16 %v1470, %v1467
    %v1525 = vpack.c.b16 %v1471, %v1468
    %v1526 = vpack.c.b16 %v1472, %v1469
    %v1527 = vpack.c.b16 %v1476, %v1473
    %v1528 = vpack.c.b16 %v1477, %v1474
    %v1529 = vpack.c.b16 %v1478, %v1475
    %v1530 = vpack.c.b16 %v1482, %v1479
    %v1531 = vpack.c.b16 %v1483, %v1480
    %v1532 = vpack.c.b16 %v1484, %v1481
    %1581 = vmatprep.subr.bf16.mxu0 %v1486
    %1582 = vmatpush1.bf16.msra.mxu0 %v1485
    %1583 = vmatprep.subr.bf16.mxu0 %v1489
    %1584 = vmatpush1.bf16.msra.mxu0 %v1488
    %1585 = vmatprep.subr.bf16.mxu0 %v1492
    %1586 = vmatpush1.bf16.msra.mxu0 %v1491
    %1587 = vmatprep.subr.bf16.mxu0 %v1495
    %1588 = vmatpush1.bf16.msra.mxu0 %v1494
    %1589 = vmatprep.subr.bf16.mxu0 %v1498
    %1590 = vmatpush1.bf16.msra.mxu0 %v1497
    %1591 = vmatprep.subr.bf16.mxu0 %v1501
    %1592 = vmatpush1.bf16.msra.mxu0 %v1500
    %1593 = vmatprep.subr.bf16.mxu0 %v1504
    %1594 = vmatpush1.bf16.msra.mxu0 %v1503
    %1595 = vmatprep.subr.bf16.mxu0 %v1507
    %1596 = vmatpush1.bf16.msra.mxu0 %v1506
    %1597 = vmatprep.subr.bf16.mxu0 %v1510
    %1598 = vmatpush1.bf16.msra.mxu0 %v1509
    %1599 = vmatprep.subr.bf16.mxu0 %v1513
    %1600 = vmatpush1.bf16.msra.mxu0 %v1512
    %1601 = vmatprep.subr.bf16.mxu0 %v1516
    %1602 = vmatpush1.bf16.msra.mxu0 %v1515
    %1603 = vmatprep.subr.bf16.mxu0 %v1519
    %1604 = vmatpush1.bf16.msra.mxu0 %v1518
    %1605 = vmatprep.subr.bf16.mxu0 %v1522
    %1606 = vmatpush1.bf16.msra.mxu0 %v1521
    %1607 = vmatprep.subr.bf16.mxu0 %v1525
    %1608 = vmatpush1.bf16.msra.mxu0 %v1524
    %1609 = vmatprep.subr.bf16.mxu0 %v1528
    %1610 = vmatpush1.bf16.msra.mxu0 %v1527
    %1611 = vmatprep.subr.bf16.mxu0 %v1531
    %1612 = vmatpush1.bf16.msra.mxu0 %v1530
    %1613 = vmatprep.mubr.bf16.mxu0 %v1243
    %1614 = vmatmul.mubr.bf16.gmra.mrb[0].mxu0 %v1242
    %v1615 = vpop.f32.mrb[0].mxu0
    %v1616 = vadd.f32 %v1313, %v1615
    %v1617 = vpop.f32.mrb[0].mxu0
    %v1618 = vadd.f32 %v1317, %v1617
    %v1619 = vpop.f32.mrb[0].mxu0
    %v1620 = vpop.f32.mrb[0].mxu0
    %1621 = vdwg.mxu0
    %1622 = vmatprep.subr.bf16.mxu0 0
    %1623 = vmatpush1.bf16.msra.mxu0 %v1487
    %1624 = vmatprep.subr.bf16.mxu0 0
    %1625 = vmatpush1.bf16.msra.mxu0 %v1490
    %1626 = vmatprep.subr.bf16.mxu0 0
    %1627 = vmatpush1.bf16.msra.mxu0 %v1493
    %1628 = vmatprep.subr.bf16.mxu0 0
    %1629 = vmatpush1.bf16.msra.mxu0 %v1496
    %1630 = vmatprep.subr.bf16.mxu0 0
    %1631 = vmatpush1.bf16.msra.mxu0 %v1499
    %1632 = vmatprep.subr.bf16.mxu0 0
    %1633 = vmatpush1.bf16.msra.mxu0 %v1502
    %1634 = vmatprep.subr.bf16.mxu0 0
    %1635 = vmatpush1.bf16.msra.mxu0 %v1505
    %1636 = vmatprep.subr.bf16.mxu0 0
    %1637 = vmatpush1.bf16.msra.mxu0 %v1508
    %1638 = vmatprep.subr.bf16.mxu0 0
    %1639 = vmatpush1.bf16.msra.mxu0 %v1511
    %1640 = vmatprep.subr.bf16.mxu0 0
    %1641 = vmatpush1.bf16.msra.mxu0 %v1514
    %1642 = vmatprep.subr.bf16.mxu0 0
    %1643 = vmatpush1.bf16.msra.mxu0 %v1517
    %1644 = vmatprep.subr.bf16.mxu0 0
    %1645 = vmatpush1.bf16.msra.mxu0 %v1520
    %1646 = vmatprep.subr.bf16.mxu0 0
    %1647 = vmatpush1.bf16.msra.mxu0 %v1523
    %1648 = vmatprep.subr.bf16.mxu0 0
    %1649 = vmatpush1.bf16.msra.mxu0 %v1526
    %1650 = vmatprep.subr.bf16.mxu0 0
    %1651 = vmatpush1.bf16.msra.mxu0 %v1529
    %1652 = vmatprep.subr.bf16.mxu0 0
    %1653 = vmatpush1.bf16.msra.mxu0 %v1532
    %1654 = vmatprep.mubr.bf16.mxu0 %v1243
    %1655 = vmatmul.mubr.bf16.gmra.mrb[0].mxu0 %v1242
    %v1656 = vpop.f32.mrb[0].mxu0
    %v1657 = vadd.f32 %v1321, %v1656
    %v1658 = vpop.f32.mrb[0].mxu0
    %v1659 = vpop.f32.mrb[0].mxu0
    %v1660 = vpop.f32.mrb[0].mxu0
    %1661 = vdwg.mxu0
    %v1662 = vmax.f32 %v1616, 0.0
    %v1663 = vmax.f32 %v1618, 0.0
    %v1664 = vmax.f32 %v1657, 0.0
    %v1665 = vpack.c.bf16 %v1662, %v1662
    %v1666 = vpack.c.bf16 %v1663, %v1663
    %v1667 = vpack.c.bf16 %v1664, %v1664
    %v1668 = vld [vmem:[#allocation11] sm:$0xf]
    %v1669 = vld [vmem:[#allocation11 + $0x4] sm:$0xf]
    %v1670 = vld [vmem:[#allocation11 + $0x8] sm:$0xf]
    %v1671 = vld [vmem:[#allocation11 + $0xc] sm:$0xf]
    %v1672 = vld [vmem:[#allocation11 + $0x10] sm:$0xf]
    %v1673 = vld [vmem:[#allocation11 + $0x14] sm:$0xf]
    %v1674 = vld [vmem:[#allocation11 + $0x18] sm:$0xf]
    %v1675 = vld [vmem:[#allocation11 + $0x1c] sm:$0xf]
    %v1676 = vld [vmem:[#allocation11 + $0x20] sm:$0xf]
    %v1677 = vld [vmem:[#allocation11 + $0x24] sm:$0xf]
    %v1678 = vld [vmem:[#allocation11 + $0x28] sm:$0xf]
    %v1679 = vld [vmem:[#allocation11 + $0x2c] sm:$0xf]
    %v1680 = vld [vmem:[#allocation11 + $0x30] sm:$0xf]
    %v1681 = vld [vmem:[#allocation11 + $0x34] sm:$0xf]
    %v1682 = vld [vmem:[#allocation11 + $0x38] sm:$0xf]
    %v1683 = vld [vmem:[#allocation11 + $0x3c] sm:$0xf]
    %v1684 = vld [vmem:[#allocation11 + $0x40] sm:$0xf]
    %v1685 = vld [vmem:[#allocation11 + $0x44] sm:$0xf]
    %v1686 = vld [vmem:[#allocation11 + $0x48] sm:$0xf]
    %v1687 = vld [vmem:[#allocation11 + $0x4c] sm:$0xf]
    %v1688 = vld [vmem:[#allocation11 + $0x50] sm:$0xf]
    %v1689 = vld [vmem:[#allocation11 + $0x54] sm:$0xf]
    %v1690 = vld [vmem:[#allocation11 + $0x58] sm:$0xf]
    %v1691 = vld [vmem:[#allocation11 + $0x5c] sm:$0xf]
    %v1692 = vld [vmem:[#allocation11 + $0x60] sm:$0xf]
    %v1693 = vld [vmem:[#allocation11 + $0x64] sm:$0xf]
    %v1694 = vld [vmem:[#allocation11 + $0x68] sm:$0xf]
    %v1695 = vld [vmem:[#allocation11 + $0x6c] sm:$0xf]
    %v1696 = vld [vmem:[#allocation11 + $0x70] sm:$0xf]
    %v1697 = vld [vmem:[#allocation11 + $0x74] sm:$0xf]
    %v1698 = vld [vmem:[#allocation11 + $0x78] sm:$0xf]
    %v1699 = vld [vmem:[#allocation11 + $0x7c] sm:$0xf]
    %v1700 = vld [vmem:[#allocation11 + $0x80] sm:$0xf]
    %v1701 = vld [vmem:[#allocation11 + $0x84] sm:$0xf]
    %v1702 = vld [vmem:[#allocation11 + $0x88] sm:$0xf]
    %v1703 = vld [vmem:[#allocation11 + $0x8c] sm:$0xf]
    %v1704 = vld [vmem:[#allocation11 + $0x90] sm:$0xf]
    %v1705 = vld [vmem:[#allocation11 + $0x94] sm:$0xf]
    %v1706 = vld [vmem:[#allocation11 + $0x98] sm:$0xf]
    %v1707 = vld [vmem:[#allocation11 + $0x9c] sm:$0xf]
    %v1708 = vld [vmem:[#allocation11 + $0xa0] sm:$0xf]
    %v1709 = vld [vmem:[#allocation11 + $0xa4] sm:$0xf]
    %v1710 = vld [vmem:[#allocation11 + $0xa8] sm:$0xf]
    %v1711 = vld [vmem:[#allocation11 + $0xac] sm:$0xf]
    %v1712 = vld [vmem:[#allocation11 + $0xb0] sm:$0xf]
    %v1713 = vld [vmem:[#allocation11 + $0xb4] sm:$0xf]
    %v1714 = vld [vmem:[#allocation11 + $0xb8] sm:$0xf]
    %v1715 = vld [vmem:[#allocation11 + $0xbc] sm:$0xf]
    %v1716 = vld [vmem:[%s12] sm:$0x1]
    %v1718 = vlaneseq
    %v1719 = vshrl.u32 %v1718, 7
    %v1720 = vsub.s32 0, %v1719
    %v1721 = vrot.slane %v1716, %v1720
    %v1771 = vunpack.c.l.b16 %v1668
    %v1772 = vunpack.c.l.b16 %v1669
    %v1773 = vunpack.c.l.b16 %v1670
    %v1774 = vunpack.c.l.b16 %v1671
    %v1775 = vunpack.c.l.b16 %v1672
    %v1776 = vunpack.c.l.b16 %v1673
    %v1777 = vunpack.c.l.b16 %v1674
    %v1778 = vunpack.c.l.b16 %v1675
    %v1779 = vunpack.c.l.b16 %v1676
    %v1780 = vunpack.c.l.b16 %v1677
    %v1781 = vunpack.c.l.b16 %v1678
    %v1782 = vunpack.c.l.b16 %v1679
    %v1783 = vunpack.c.l.b16 %v1680
    %v1784 = vunpack.c.l.b16 %v1681
    %v1785 = vunpack.c.l.b16 %v1682
    %v1786 = vunpack.c.l.b16 %v1683
    %v1787 = vunpack.c.l.b16 %v1684
    %v1788 = vunpack.c.l.b16 %v1685
    %v1789 = vunpack.c.l.b16 %v1686
    %v1790 = vunpack.c.l.b16 %v1687
    %v1791 = vunpack.c.l.b16 %v1688
    %v1792 = vunpack.c.l.b16 %v1689
    %v1793 = vunpack.c.l.b16 %v1690
    %v1794 = vunpack.c.l.b16 %v1691
    %v1795 = vunpack.c.l.b16 %v1692
    %v1796 = vunpack.c.l.b16 %v1693
    %v1797 = vunpack.c.l.b16 %v1694
    %v1798 = vunpack.c.l.b16 %v1695
    %v1799 = vunpack.c.l.b16 %v1696
    %v1800 = vunpack.c.l.b16 %v1697
    %v1801 = vunpack.c.l.b16 %v1698
    %v1802 = vunpack.c.l.b16 %v1699
    %v1803 = vunpack.c.l.b16 %v1700
    %v1804 = vunpack.c.l.b16 %v1701
    %v1805 = vunpack.c.l.b16 %v1702
    %v1806 = vunpack.c.l.b16 %v1703
    %v1807 = vunpack.c.l.b16 %v1704
    %v1808 = vunpack.c.l.b16 %v1705
    %v1809 = vunpack.c.l.b16 %v1706
    %v1810 = vunpack.c.l.b16 %v1707
    %v1811 = vunpack.c.l.b16 %v1708
    %v1812 = vunpack.c.l.b16 %v1709
    %v1813 = vunpack.c.l.b16 %v1710
    %v1814 = vunpack.c.l.b16 %v1711
    %v1815 = vunpack.c.l.b16 %v1712
    %v1816 = vunpack.c.l.b16 %v1713
    %v1817 = vunpack.c.l.b16 %v1714
    %v1818 = vunpack.c.l.b16 %v1715
    %v1819 = vpack.c.b16 %v1772, %v1771
    %v1820 = vpack.c.b16 %v1774, %v1773
    %v1821 = vpack.c.b16 %v1776, %v1775
    %v1822 = vpack.c.b16 %v1778, %v1777
    %v1823 = vpack.c.b16 %v1780, %v1779
    %v1824 = vpack.c.b16 %v1782, %v1781
    %v1825 = vpack.c.b16 %v1784, %v1783
    %v1826 = vpack.c.b16 %v1786, %v1785
    %v1827 = vpack.c.b16 %v1788, %v1787
    %v1828 = vpack.c.b16 %v1790, %v1789
    %v1829 = vpack.c.b16 %v1792, %v1791
    %v1830 = vpack.c.b16 %v1794, %v1793
    %v1831 = vpack.c.b16 %v1796, %v1795
    %v1832 = vpack.c.b16 %v1798, %v1797
    %v1833 = vpack.c.b16 %v1800, %v1799
    %v1834 = vpack.c.b16 %v1802, %v1801
    %v1835 = vpack.c.b16 %v1804, %v1803
    %v1836 = vpack.c.b16 %v1806, %v1805
    %v1837 = vpack.c.b16 %v1808, %v1807
    %v1838 = vpack.c.b16 %v1810, %v1809
    %v1839 = vpack.c.b16 %v1812, %v1811
    %v1840 = vpack.c.b16 %v1814, %v1813
    %v1841 = vpack.c.b16 %v1816, %v1815
    %v1842 = vpack.c.b16 %v1818, %v1817
    %1867 = vmatprep.subr.bf16.mxu0 0
    %1868 = vmatpush1.bf16.msra.mxu0 %v1819
    %1869 = vmatprep.subr.bf16.mxu0 0
    %1870 = vmatpush1.bf16.msra.mxu0 %v1820
    %1871 = vmatprep.subr.bf16.mxu0 0
    %1872 = vmatpush1.bf16.msra.mxu0 %v1821
    %1873 = vmatprep.subr.bf16.mxu0 0
    %1874 = vmatpush1.bf16.msra.mxu0 %v1822
    %1875 = vmatprep.subr.bf16.mxu0 0
    %1876 = vmatpush1.bf16.msra.mxu0 %v1823
    %1877 = vmatprep.subr.bf16.mxu0 0
    %1878 = vmatpush1.bf16.msra.mxu0 %v1824
    %1879 = vmatprep.subr.bf16.mxu0 0
    %1880 = vmatpush1.bf16.msra.mxu0 %v1825
    %1881 = vmatprep.subr.bf16.mxu0 0
    %1882 = vmatpush1.bf16.msra.mxu0 %v1826
    %1883 = vmatprep.subr.bf16.mxu0 0
    %1884 = vmatpush1.bf16.msra.mxu0 %v1827
    %1885 = vmatprep.subr.bf16.mxu0 0
    %1886 = vmatpush1.bf16.msra.mxu0 %v1828
    %1887 = vmatprep.subr.bf16.mxu0 0
    %1888 = vmatpush1.bf16.msra.mxu0 %v1829
    %1889 = vmatprep.subr.bf16.mxu0 0
    %1890 = vmatpush1.bf16.msra.mxu0 %v1830
    %1891 = vmatprep.subr.bf16.mxu0 0
    %1892 = vmatpush1.bf16.msra.mxu0 %v1831
    %1893 = vmatprep.subr.bf16.mxu0 0
    %1894 = vmatpush1.bf16.msra.mxu0 %v1832
    %1895 = vmatprep.subr.bf16.mxu0 0
    %1896 = vmatpush1.bf16.msra.mxu0 %v1833
    %1897 = vmatprep.subr.bf16.mxu0 0
    %1898 = vmatpush1.bf16.msra.mxu0 %v1834
    %1899 = vmatprep.mubr.bf16.mxu0 %v1666
    %1900 = vmatmul.mubr.bf16.gmra.mrb[0].mxu0 %v1665
    %v1901 = vpop.f32.mrb[0].mxu0
    %v1902 = vadd.f32 %v1721, %v1901
    %v1903 = vpop.f32.mrb[0].mxu0
    %v1904 = vpop.f32.mrb[0].mxu0
    %v1905 = vpop.f32.mrb[0].mxu0
    %1906 = vdwg.mxu0
    %1907 = vmatprep.subr.bf16.mxu0 0
    %1908 = vmatpush1.bf16.msra.mxu0 %v1835
    %1909 = vmatprep.subr.bf16.mxu0 0
    %1910 = vmatpush1.bf16.msra.mxu0 %v1836
    %1911 = vmatprep.subr.bf16.mxu0 0
    %1912 = vmatpush1.bf16.msra.mxu0 %v1837
    %1913 = vmatprep.subr.bf16.mxu0 0
    %1914 = vmatpush1.bf16.msra.mxu0 %v1838
    %1915 = vmatprep.subr.bf16.mxu0 0
    %1916 = vmatpush1.bf16.msra.mxu0 %v1839
    %1917 = vmatprep.subr.bf16.mxu0 0
    %1918 = vmatpush1.bf16.msra.mxu0 %v1840
    %1919 = vmatprep.subr.bf16.mxu0 0
    %1920 = vmatpush1.bf16.msra.mxu0 %v1841
    %1921 = vmatprep.subr.bf16.mxu0 0
    %1922 = vmatpush1.bf16.msra.mxu0 %v1842
    %1923 = vmatprep.subr.bf16.mxu0 0
    %1924 = vmatpush1.bf16.msra.mxu0 0
    %1925 = vmatprep.subr.bf16.mxu0 0
    %1926 = vmatpush1.bf16.msra.mxu0 0
    %1927 = vmatprep.subr.bf16.mxu0 0
    %1928 = vmatpush1.bf16.msra.mxu0 0
    %1929 = vmatprep.subr.bf16.mxu0 0
    %1930 = vmatpush1.bf16.msra.mxu0 0
    %1931 = vmatprep.subr.bf16.mxu0 0
    %1932 = vmatpush1.bf16.msra.mxu0 0
    %1933 = vmatprep.subr.bf16.mxu0 0
    %1934 = vmatpush1.bf16.msra.mxu0 0
    %1935 = vmatprep.subr.bf16.mxu0 0
    %1936 = vmatpush1.bf16.msra.mxu0 0
    %1937 = vmatprep.subr.bf16.mxu0 0
    %1938 = vmatpush1.bf16.msra.mxu0 0
    %1939 = vmatprep.mubr.bf16.mxu0 0
    %1940 = vmatmul.mubr.bf16.gmra.mrb[0].mxu0 %v1667
    %v1941 = vpop.f32.mrb[0].mxu0
    %v1942 = vadd.f32 %v1902, %v1941
    %v1943 = vpop.f32.mrb[0].mxu0
    %v1944 = vpop.f32.mrb[0].mxu0
    %v1945 = vpop.f32.mrb[0].mxu0
    %1946 = vdwg.mxu0
    %1947 = vst [vmem:[#allocation13] sm:$0xff] %v1942
    // Predicated region
    $region78: #{autoencoder_forward.1} parent=1 // pred_check
      _
    $region79: #{autoencoder_forward.1} parent=1 // pred_check_branch
      %1949 = sbr.rel (0) target = $region81
    $region80: #{autoencoder_forward.1} parent=1 // pred_region
      %s1951 = ssub.s32 128, 128
      %1952 = vsyncadd [#allocation4], %s1951
      %s1954 = sshll.u32 [#allocation13], 4
      %s1955 = int_to_ptr.vmem [resolvable:$true] %s1954
      %1957 = dma.vmem_to_hbm [thread:$0]  %s1955, 128, %s13, [#allocation4]
    $region81: #{autoencoder_forward.1} parent=1 // pred_fallthru
      _
    // Predicated region
    $region82: #{autoencoder_forward.1} parent=1 // pred_check
      _
    $region83: #{autoencoder_forward.1} parent=1 // pred_check_branch
      %1959 = sbr.rel (0) target = $region85
    $region84: #{autoencoder_forward.1} parent=1 // pred_region
      %1960 = dma.done [#allocation4], 128
    $region85: #{autoencoder_forward.1} parent=1 // pred_fallthru
      _
    %1961 = vsyncpa [#allocation3], 1
    %1962 = vsyncpa [#allocation6], 1
    %1963 = vsyncpa [#allocation9], 1
    %1964 = vsyncpa [#allocation12], 1
    %1965 = vsyncpa [#allocation4], 1

</llo_original>
